<compile_context>
chip_gen: v5e
topology: v5e:2x2
jax: 0.10.0
libtpu: 0.0.40
codegen_flags: <defaults>
</compile_context>

<pallas_src>
import functools

import jax
import jax.numpy as jnp
from jax.experimental import pallas as pl
from jax.experimental.pallas import tpu as pltpu


def _round_up(x, m):
    return ((x + m - 1) // m) * m


def _dout_seq_kernel(x_ref, w_ref, sd_ref, so_ref,          # inputs
                     z_ref, sd_o_ref, so_o_ref,             # outputs
                     y_ref,                                  # VMEM scratch
                     *, n_steps, batch, n, c_out, alpha, beta, v_leak, n_groups):
    n_pad = sd_ref.shape[-1]

    # (A) Hoisted, state-independent matmul: one MXU pass over ALL steps.
    #     Columns [n : n+c_out) of w_ref hold the block-stacked per-group weight sum, so
    #     y[:, n:n+c_out] is sum_g (x_g @ W_g) for free (those lanes were zero padding before).
    y_ref[...] = jnp.dot(x_ref[...], w_ref[...],
                         preferred_element_type=jnp.float32,
                         precision=jax.lax.Precision.HIGHEST)

    # Per-lane alpha*v_leak: v_leak on the per-group dendrite lanes, G*v_leak on the
    # sum-group lanes (keeps the sum lanes exactly equal to the sum of the group lanes).
    lane = jax.lax.broadcasted_iota(jnp.int32, (1, n_pad), 1)
    a_vleak_d = alpha * jnp.where(lane < n, v_leak, n_groups * v_leak).astype(jnp.float32)
    a_vleak_o = jnp.float32(alpha * v_leak)
    one_m_a = 1.0 - alpha

    def step(t, carry, dyn_t):
        vd, i_d, vo, i_o = carry
        off = t * batch
        if dyn_t:
            off = pl.multiple_of(off, batch)
        y_t = y_ref[pl.ds(off, batch), :]                      # [B, n_pad]

        # DENDCell leaky integrator on all groups + the sum group (lane-dense, ~1 vreg)
        ij_d = i_d + y_t
        vd_new = one_m_a * vd + a_vleak_d + alpha * ij_d
        id_new = beta * ij_d

        # x0 = sum over groups of the dendrite outputs == the sum-group lanes
        x0 = vd_new[:, n:n + c_out]

        # LInoweight readout
        ij_o = i_o + x0
        vo_new = one_m_a * vo + a_vleak_o + alpha * ij_o
        io_new = beta * ij_o

        z_ref[t] = vo_new                                      # per-step readout output
        return vd_new, id_new, vo_new, io_new

    carry = (sd_ref[0], sd_ref[1], so_ref[0], so_ref[1])
    if n_steps <= 64:
        # Short fixed trip count: fully unrolled (static offsets, scheduler visibility).
        for t in range(n_steps):
            carry = step(t, carry, dyn_t=False)
    else:
        carry = jax.lax.fori_loop(0, n_steps,
                                  lambda t, c: step(t, c, dyn_t=True), carry)

    vd_T, id_T, vo_T, io_T = carry
    sd_o_ref[0] = vd_T
    sd_o_ref[1] = id_T
    so_o_ref[0] = vo_T
    so_o_ref[1] = io_T


def prepare_weights(weights, out_channels):
    """Init-time prep (hoisted out of the forward path).

    weights: list of [Cin_g, Cout] arrays (already transposed from torch's [Cout, Cin]).
    Returns W_bd[sum(Cin), n_pad] where
      * columns [g*Cout:(g+1)*Cout] hold W_g on group g's rows (block diagonal), and
      * columns [G*Cout : G*Cout+Cout] hold the block-stacked W_g's ("sum group"), so
        (x_cat @ W_bd)[:, G*Cout:G*Cout+Cout] == sum_g x_g @ W_g.
    """
    n_groups = len(weights)
    c_out = int(out_channels)
    k_total = sum(int(w.shape[0]) for w in weights)
    n = n_groups * c_out
    n_pad = _round_up(n + c_out, 128)
    w_bd = jnp.zeros((k_total, n_pad), jnp.float32)
    row = 0
    for g, w in enumerate(weights):
        w = jnp.asarray(w, jnp.float32)
        rows = slice(row, row + w.shape[0])
        w_bd = w_bd.at[rows, g * c_out:(g + 1) * c_out].set(w)
        w_bd = w_bd.at[rows, n:n + c_out].set(w)          # sum-group columns
        row += int(w.shape[0])
    return w_bd


def pack_state(sd, so, out_channels):
    """One-time packing of the module's list-of-(v, i) states into lane-dense slabs."""
    n_groups = len(sd)
    c_out = int(out_channels)
    n = n_groups * c_out
    n_pad = _round_up(n + c_out, 128)
    B = sd[0][0].shape[0]
    sdv = jnp.concatenate([jnp.asarray(s[0], jnp.float32) for s in sd], axis=1)
    sdi = jnp.concatenate([jnp.asarray(s[1], jnp.float32) for s in sd], axis=1)
    vsum = sum(jnp.asarray(s[0], jnp.float32) for s in sd)   # sum-group lanes
    isum = sum(jnp.asarray(s[1], jnp.float32) for s in sd)
    extra = n_pad - (n + c_out)
    pads = [jnp.zeros((B, extra), jnp.float32)] if extra else []
    sdv = jnp.concatenate([sdv, vsum] + pads, axis=1)
    sdi = jnp.concatenate([sdi, isum] + pads, axis=1)
    sd_slab = jnp.stack([sdv, sdi], axis=0)                               # [2, B, n_pad]
    so_slab = jnp.stack([jnp.asarray(so[0], jnp.float32),
                         jnp.asarray(so[1], jnp.float32)], axis=0)        # [2, B, c_out]
    return sd_slab, so_slab


def unpack_state(sd_slab, so_slab, n_groups, out_channels):
    c_out = int(out_channels)
    sd = [(sd_slab[0, :, g * c_out:(g + 1) * c_out],
           sd_slab[1, :, g * c_out:(g + 1) * c_out]) for g in range(n_groups)]
    so = (so_slab[0], so_slab[1])
    return sd, so


def make_dout_forward(in_channels, out_channels, *, dt, tau_syn_inv, tau_mem_inv, v_leak):
    """Builds a jitted forward(x_seq, w_bd, sd_slab, so_slab) -> (z_seq, sd_slab', so_slab').

    x_seq:   [T, B, sum(Cin)]  pre-concatenated group inputs (concat once per sequence).
             T == 1 reproduces the module's single-step forward.
    sd_slab: [2, B, n_pad]     packed dendrite (v, i) state (see pack_state).
    so_slab: [2, B, Cout]      packed LI (v, i) state.
    z_seq:   [T, B, Cout]      the module output z at every step.
    """
    n_groups = len(in_channels)
    c_out = int(out_channels)
    n = n_groups * c_out
    n_pad = _round_up(n + c_out, 128)
    k_total = int(sum(in_channels))
    alpha = float(dt * tau_mem_inv)
    beta = float(1.0 - dt * tau_syn_inv)

    @jax.jit
    def forward(x_seq, w_bd, sd_slab, so_slab):
        T, B, K = x_seq.shape
        assert K == k_total and w_bd.shape == (k_total, n_pad)
        x2d = x_seq.reshape(T * B, K).astype(jnp.float32)

        kernel = functools.partial(
            _dout_seq_kernel, n_steps=T, batch=B, n=n, c_out=c_out,
            alpha=alpha, beta=beta, v_leak=float(v_leak), n_groups=n_groups)

        vmem = lambda: pl.BlockSpec(memory_space=pltpu.MemorySpace.VMEM)
        cost = pl.CostEstimate(
            flops=2 * T * B * K * n_pad + 12 * T * B * n_pad,
            transcendentals=0,
            bytes_accessed=4 * (T * B * K + k_total * n_pad + T * B * c_out
                                + 2 * 2 * B * n_pad + 2 * 2 * B * c_out))

        z_seq, sd_o, so_o = pl.pallas_call(
            kernel,
            out_shape=(
                jax.ShapeDtypeStruct((T, B, c_out), jnp.float32),   # z per step
                jax.ShapeDtypeStruct((2, B, n_pad), jnp.float32),   # dendrite state slab
                jax.ShapeDtypeStruct((2, B, c_out), jnp.float32),   # LI state slab
            ),
            in_specs=[vmem() for _ in range(4)],
            out_specs=tuple(vmem() for _ in range(3)),
            scratch_shapes=[pltpu.VMEM((T * B, n_pad), jnp.float32)],   # hoisted y = x @ W_bd
            input_output_aliases={2: 1, 3: 2},   # in-place state update
            cost_estimate=cost,
        )(x2d, w_bd, sd_slab, so_slab)
        return z_seq, sd_o, so_o

    return forward


def _reference_seq(groups_seq, weights, sd, so, *, dt, tau_syn_inv, tau_mem_inv, v_leak):
    """Pure-JAX port of DOutWrapper.forward, applied step by step over the sequence."""
    def cell(inp, state):
        v, i = state
        i_jump = i + inp
        v_new = v + dt * tau_mem_inv * ((v_leak - v) + i_jump)
        i_new = i_jump - dt * tau_syn_inv * i_jump
        return v_new, (v_new, i_new)

    def lin(x, w):
        return jnp.dot(x, w, precision=jax.lax.Precision.HIGHEST)

    zs = []
    for groups in groups_seq:
        sd_o = [None] * len(groups)
        x0, sd_o[0] = cell(lin(groups[0], weights[0]), sd[0])
        for g in range(1, len(groups)):
            tmp, sd_o[g] = cell(lin(groups[g], weights[g]), sd[g])
            x0 = x0 + tmp
        z, so = cell(x0, so)
        sd = sd_o
        zs.append(z)
    return jnp.stack(zs, axis=0), sd, so


if __name__ == "__main__":
    in_channels = [12, 20, 16]      # 3 groups with differing input widths
    out_channels = 32
    B = 8
    T = 16
    dt = 1e-3
    # nonzero v_leak exercises the G*v_leak correction on the sum-group lanes
    lifparams = dict(tau_syn_inv=200.0, tau_mem_inv=100.0, v_leak=0.05)

    n_g = len(in_channels)
    key = jax.random.PRNGKey(0)
    k_x, k_w, k_sd, k_so = jax.random.split(key, 4)

    keys_x = jax.random.split(k_x, T * n_g)
    groups_seq = [[jax.random.normal(keys_x[t * n_g + g], (B, c), dtype=jnp.float32)
                   for g, c in enumerate(in_channels)] for t in range(T)]

    # torch Linear(in_c, out_c, bias=False).weight is [out_c, in_c]; store the transpose.
    keys_w = jax.random.split(k_w, n_g)
    weights = [0.1 * jax.random.normal(keys_w[g], (c, out_channels), dtype=jnp.float32)
               for g, c in enumerate(in_channels)]

    keys_sd = jax.random.split(k_sd, 2 * n_g)
    sd0 = [(0.1 * jax.random.normal(keys_sd[2 * g], (B, out_channels), dtype=jnp.float32),
            0.1 * jax.random.normal(keys_sd[2 * g + 1], (B, out_channels), dtype=jnp.float32))
           for g in range(n_g)]
    keys_so = jax.random.split(k_so, 2)
    so0 = (0.1 * jax.random.normal(keys_so[0], (B, out_channels), dtype=jnp.float32),
           0.1 * jax.random.normal(keys_so[1], (B, out_channels), dtype=jnp.float32))

    # pure-JAX reference (module forward applied step by step)
    z_ref_seq, sd_ref_fin, so_ref_fin = _reference_seq(
        groups_seq, weights, sd0, so0, dt=dt, **lifparams)

    # init-time prep (hoisted out of the forward path) + one-time per-sequence glue
    w_bd = prepare_weights(weights, out_channels)
    sd_slab, so_slab = pack_state(sd0, so0, out_channels)
    x_seq = jnp.stack([jnp.concatenate(g, axis=1) for g in groups_seq], axis=0)  # [T, B, K]

    forward = make_dout_forward(in_channels, out_channels, dt=dt, **lifparams)
    z_seq, sd_slab_o, so_slab_o = forward(x_seq, w_bd, sd_slab, so_slab)
    jax.block_until_ready(z_seq)

    sd_fin, so_fin = unpack_state(sd_slab_o, so_slab_o, n_g, out_channels)

    tol = dict(atol=5e-5, rtol=5e-5)
    assert jnp.allclose(z_seq, z_ref_seq, **tol), "z mismatch"
    for (av, ai), (bv, bi) in zip(sd_fin, sd_ref_fin):
        assert jnp.allclose(av, bv, **tol), "dendrite v mismatch"
        assert jnp.allclose(ai, bi, **tol), "dendrite i mismatch"
    assert jnp.allclose(so_fin[0], so_ref_fin[0], **tol), "LI v mismatch"
    assert jnp.allclose(so_fin[1], so_ref_fin[1], **tol), "LI i mismatch"

    print("KERNEL_OK")
</pallas_src>

<mosaic_0001>
module attributes {stable_mosaic.version = 11 : i64} {
  func.func @_dout_seq_kernel(%arg0: memref<128x48xf32, #tpu.memory_space<vmem>>, %arg1: memref<48x128xf32, #tpu.memory_space<vmem>>, %arg2: memref<2x8x128xf32, #tpu.memory_space<vmem>>, %arg3: memref<2x8x32xf32, #tpu.memory_space<vmem>>, %arg4: memref<16x8x32xf32, #tpu.memory_space<vmem>>, %arg5: memref<2x8x128xf32, #tpu.memory_space<vmem>>, %arg6: memref<2x8x32xf32, #tpu.memory_space<vmem>>, %arg7: memref<128x128xf32, #tpu.memory_space<vmem>>) attributes {dimension_semantics = [], scalar_prefetch = 0 : i64, scratch_operands = 1 : i64, tpu.core_type = #tpu.core_type<tc>} {
    %c0 = arith.constant 0 : index
    %c0_0 = arith.constant 0 : index
    %0 = vector.load %arg0[%c0, %c0_0] : memref<128x48xf32, #tpu.memory_space<vmem>>, vector<128x48xf32>
    %c0_1 = arith.constant 0 : index
    %c0_2 = arith.constant 0 : index
    %1 = vector.load %arg1[%c0_1, %c0_2] : memref<48x128xf32, #tpu.memory_space<vmem>>, vector<48x128xf32>
    %cst = arith.constant dense<0.000000e+00> : vector<128x128xf32>
    %2 = tpu.matmul %0, %1, %cst {dimension_numbers = #tpu.dot_dimension_numbers<[1], [0], [0], [1], [0, 0, 1, 1], [], []>, precision = #tpu.contract_precision<fp32>} : vector<128x48xf32>, vector<48x128xf32>, vector<128x128xf32> -> vector<128x128xf32>
    %c0_3 = arith.constant 0 : index
    %c0_4 = arith.constant 0 : index
    %3 = vector.load %arg7[%c0_3, %c0_4] : memref<128x128xf32, #tpu.memory_space<vmem>>, vector<128x128xf32>
    tpu.vector_store %arg7[%c0_3, %c0_4], %2 {strides = array<i32>} : memref<128x128xf32, #tpu.memory_space<vmem>>, vector<128x128xf32>,
    %4 = tpu.iota {dimensions = array<i32: 1>} : vector<1x128xi32>
    %c96_i32 = arith.constant 96 : i32
    %5 = vector.broadcast %c96_i32 : i32 to vector<1x128xi32>
    %6 = arith.cmpi slt, %4, %5 : vector<1x128xi32>
    %cst_5 = arith.constant 5.000000e-02 : f32
    %cst_6 = arith.constant 1.500000e-01 : f32
    %7 = vector.broadcast %cst_5 : f32 to vector<1x128xf32>
    %8 = vector.broadcast %cst_6 : f32 to vector<1x128xf32>
    %9 = arith.select %6, %7, %8 : vector<1x128xi1>, vector<1x128xf32>
    %cst_7 = arith.constant 1.000000e-01 : f32
    %10 = vector.broadcast %cst_7 : f32 to vector<1x128xf32>
    %11 = arith.mulf %10, %9 : vector<1x128xf32>
    %c0_8 = arith.constant 0 : index
    %c0_9 = arith.constant 0 : index
    %c0_10 = arith.constant 0 : index
    %12 = vector.load %arg2[%c0_8, %c0_9, %c0_10] : memref<2x8x128xf32, #tpu.memory_space<vmem>>, vector<1x8x128xf32>
    %13 = vector.shape_cast %12 : vector<1x8x128xf32> to vector<8x128xf32>
    %c1 = arith.constant 1 : index
    %c0_11 = arith.constant 0 : index
    %c0_12 = arith.constant 0 : index
    %14 = vector.load %arg2[%c1, %c0_11, %c0_12] : memref<2x8x128xf32, #tpu.memory_space<vmem>>, vector<1x8x128xf32>
    %15 = vector.shape_cast %14 : vector<1x8x128xf32> to vector<8x128xf32>
    %c0_13 = arith.constant 0 : index
    %c0_14 = arith.constant 0 : index
    %c0_15 = arith.constant 0 : index
    %16 = vector.load %arg3[%c0_13, %c0_14, %c0_15] : memref<2x8x32xf32, #tpu.memory_space<vmem>>, vector<1x8x32xf32>
    %17 = vector.shape_cast %16 : vector<1x8x32xf32> to vector<8x32xf32>
    %c1_16 = arith.constant 1 : index
    %c0_17 = arith.constant 0 : index
    %c0_18 = arith.constant 0 : index
    %18 = vector.load %arg3[%c1_16, %c0_17, %c0_18] : memref<2x8x32xf32, #tpu.memory_space<vmem>>, vector<1x8x32xf32>
    %19 = vector.shape_cast %18 : vector<1x8x32xf32> to vector<8x32xf32>
    %c0_19 = arith.constant 0 : index
    %c0_20 = arith.constant 0 : index
    %20 = vector.load %arg7[%c0_19, %c0_20] : memref<128x128xf32, #tpu.memory_space<vmem>>, vector<8x128xf32>
    %21 = arith.addf %15, %20 : vector<8x128xf32>
    %cst_21 = arith.constant 0.899999976 : f32
    %22 = vector.broadcast %cst_21 : f32 to vector<8x128xf32>
    %23 = arith.mulf %22, %13 : vector<8x128xf32>
    %24 = vector.broadcast %11 : vector<1x128xf32> to vector<8x128xf32>
    %25 = arith.addf %23, %24 : vector<8x128xf32>
    %cst_22 = arith.constant 1.000000e-01 : f32
    %26 = vector.broadcast %cst_22 : f32 to vector<8x128xf32>
    %27 = arith.mulf %26, %21 : vector<8x128xf32>
    %28 = arith.addf %25, %27 : vector<8x128xf32>
    %cst_23 = arith.constant 8.000000e-01 : f32
    %29 = vector.broadcast %cst_23 : f32 to vector<8x128xf32>
    %30 = arith.mulf %29, %21 : vector<8x128xf32>
    %31 = vector.extract_strided_slice %28 {offsets = [0, 96], sizes = [8, 32], strides = [1, 1]} : vector<8x128xf32> to vector<8x32xf32>
    %32 = arith.addf %19, %31 : vector<8x32xf32>
    %cst_24 = arith.constant 0.899999976 : f32
    %33 = vector.broadcast %cst_24 : f32 to vector<8x32xf32>
    %34 = arith.mulf %33, %17 : vector<8x32xf32>
    %cst_25 = arith.constant 5.000000e-03 : f32
    %35 = vector.broadcast %cst_25 : f32 to vector<8x32xf32>
    %36 = arith.addf %34, %35 : vector<8x32xf32>
    %cst_26 = arith.constant 1.000000e-01 : f32
    %37 = vector.broadcast %cst_26 : f32 to vector<8x32xf32>
    %38 = arith.mulf %37, %32 : vector<8x32xf32>
    %39 = arith.addf %36, %38 : vector<8x32xf32>
    %cst_27 = arith.constant 8.000000e-01 : f32
    %40 = vector.broadcast %cst_27 : f32 to vector<8x32xf32>
    %41 = arith.mulf %40, %32 : vector<8x32xf32>
    %c0_28 = arith.constant 0 : index
    %c0_29 = arith.constant 0 : index
    %c0_30 = arith.constant 0 : index
    %42 = vector.load %arg4[%c0_28, %c0_29, %c0_30] : memref<16x8x32xf32, #tpu.memory_space<vmem>>, vector<1x8x32xf32>
    %43 = vector.shape_cast %42 : vector<1x8x32xf32> to vector<8x32xf32>
    %44 = vector.shape_cast %39 : vector<8x32xf32> to vector<1x8x32xf32>
    tpu.vector_store %arg4[%c0_28, %c0_29, %c0_30], %44 {strides = array<i32>} : memref<16x8x32xf32, #tpu.memory_space<vmem>>, vector<1x8x32xf32>,
    %c8 = arith.constant 8 : index
    %c0_31 = arith.constant 0 : index
    %45 = vector.load %arg7[%c8, %c0_31] : memref<128x128xf32, #tpu.memory_space<vmem>>, vector<8x128xf32>
    %46 = arith.addf %30, %45 : vector<8x128xf32>
    %cst_32 = arith.constant 0.899999976 : f32
    %47 = vector.broadcast %cst_32 : f32 to vector<8x128xf32>
    %48 = arith.mulf %47, %28 : vector<8x128xf32>
    %49 = vector.broadcast %11 : vector<1x128xf32> to vector<8x128xf32>
    %50 = arith.addf %48, %49 : vector<8x128xf32>
    %cst_33 = arith.constant 1.000000e-01 : f32
    %51 = vector.broadcast %cst_33 : f32 to vector<8x128xf32>
    %52 = arith.mulf %51, %46 : vector<8x128xf32>
    %53 = arith.addf %50, %52 : vector<8x128xf32>
    %cst_34 = arith.constant 8.000000e-01 : f32
    %54 = vector.broadcast %cst_34 : f32 to vector<8x128xf32>
    %55 = arith.mulf %54, %46 : vector<8x128xf32>
    %56 = vector.extract_strided_slice %53 {offsets = [0, 96], sizes = [8, 32], strides = [1, 1]} : vector<8x128xf32> to vector<8x32xf32>
    %57 = arith.addf %41, %56 : vector<8x32xf32>
    %cst_35 = arith.constant 0.899999976 : f32
    %58 = vector.broadcast %cst_35 : f32 to vector<8x32xf32>
    %59 = arith.mulf %58, %39 : vector<8x32xf32>
    %cst_36 = arith.constant 5.000000e-03 : f32
    %60 = vector.broadcast %cst_36 : f32 to vector<8x32xf32>
    %61 = arith.addf %59, %60 : vector<8x32xf32>
    %cst_37 = arith.constant 1.000000e-01 : f32
    %62 = vector.broadcast %cst_37 : f32 to vector<8x32xf32>
    %63 = arith.mulf %62, %57 : vector<8x32xf32>
    %64 = arith.addf %61, %63 : vector<8x32xf32>
    %cst_38 = arith.constant 8.000000e-01 : f32
    %65 = vector.broadcast %cst_38 : f32 to vector<8x32xf32>
    %66 = arith.mulf %65, %57 : vector<8x32xf32>
    %c1_39 = arith.constant 1 : index
    %c0_40 = arith.constant 0 : index
    %c0_41 = arith.constant 0 : index
    %67 = vector.load %arg4[%c1_39, %c0_40, %c0_41] : memref<16x8x32xf32, #tpu.memory_space<vmem>>, vector<1x8x32xf32>
    %68 = vector.shape_cast %67 : vector<1x8x32xf32> to vector<8x32xf32>
    %69 = vector.shape_cast %64 : vector<8x32xf32> to vector<1x8x32xf32>
    tpu.vector_store %arg4[%c1_39, %c0_40, %c0_41], %69 {strides = array<i32>} : memref<16x8x32xf32, #tpu.memory_space<vmem>>, vector<1x8x32xf32>,
    %c16 = arith.constant 16 : index
    %c0_42 = arith.constant 0 : index
    %70 = vector.load %arg7[%c16, %c0_42] : memref<128x128xf32, #tpu.memory_space<vmem>>, vector<8x128xf32>
    %71 = arith.addf %55, %70 : vector<8x128xf32>
    %cst_43 = arith.constant 0.899999976 : f32
    %72 = vector.broadcast %cst_43 : f32 to vector<8x128xf32>
    %73 = arith.mulf %72, %53 : vector<8x128xf32>
    %74 = vector.broadcast %11 : vector<1x128xf32> to vector<8x128xf32>
    %75 = arith.addf %73, %74 : vector<8x128xf32>
    %cst_44 = arith.constant 1.000000e-01 : f32
    %76 = vector.broadcast %cst_44 : f32 to vector<8x128xf32>
    %77 = arith.mulf %76, %71 : vector<8x128xf32>
    %78 = arith.addf %75, %77 : vector<8x128xf32>
    %cst_45 = arith.constant 8.000000e-01 : f32
    %79 = vector.broadcast %cst_45 : f32 to vector<8x128xf32>
    %80 = arith.mulf %79, %71 : vector<8x128xf32>
    %81 = vector.extract_strided_slice %78 {offsets = [0, 96], sizes = [8, 32], strides = [1, 1]} : vector<8x128xf32> to vector<8x32xf32>
    %82 = arith.addf %66, %81 : vector<8x32xf32>
    %cst_46 = arith.constant 0.899999976 : f32
    %83 = vector.broadcast %cst_46 : f32 to vector<8x32xf32>
    %84 = arith.mulf %83, %64 : vector<8x32xf32>
    %cst_47 = arith.constant 5.000000e-03 : f32
    %85 = vector.broadcast %cst_47 : f32 to vector<8x32xf32>
    %86 = arith.addf %84, %85 : vector<8x32xf32>
    %cst_48 = arith.constant 1.000000e-01 : f32
    %87 = vector.broadcast %cst_48 : f32 to vector<8x32xf32>
    %88 = arith.mulf %87, %82 : vector<8x32xf32>
    %89 = arith.addf %86, %88 : vector<8x32xf32>
    %cst_49 = arith.constant 8.000000e-01 : f32
    %90 = vector.broadcast %cst_49 : f32 to vector<8x32xf32>
    %91 = arith.mulf %90, %82 : vector<8x32xf32>
    %c2 = arith.constant 2 : index
    %c0_50 = arith.constant 0 : index
    %c0_51 = arith.constant 0 : index
    %92 = vector.load %arg4[%c2, %c0_50, %c0_51] : memref<16x8x32xf32, #tpu.memory_space<vmem>>, vector<1x8x32xf32>
    %93 = vector.shape_cast %92 : vector<1x8x32xf32> to vector<8x32xf32>
    %94 = vector.shape_cast %89 : vector<8x32xf32> to vector<1x8x32xf32>
    tpu.vector_store %arg4[%c2, %c0_50, %c0_51], %94 {strides = array<i32>} : memref<16x8x32xf32, #tpu.memory_space<vmem>>, vector<1x8x32xf32>,
    %c24 = arith.constant 24 : index
    %c0_52 = arith.constant 0 : index
    %95 = vector.load %arg7[%c24, %c0_52] : memref<128x128xf32, #tpu.memory_space<vmem>>, vector<8x128xf32>
    %96 = arith.addf %80, %95 : vector<8x128xf32>
    %cst_53 = arith.constant 0.899999976 : f32
    %97 = vector.broadcast %cst_53 : f32 to vector<8x128xf32>
    %98 = arith.mulf %97, %78 : vector<8x128xf32>
    %99 = vector.broadcast %11 : vector<1x128xf32> to vector<8x128xf32>
    %100 = arith.addf %98, %99 : vector<8x128xf32>
    %cst_54 = arith.constant 1.000000e-01 : f32
    %101 = vector.broadcast %cst_54 : f32 to vector<8x128xf32>
    %102 = arith.mulf %101, %96 : vector<8x128xf32>
    %103 = arith.addf %100, %102 : vector<8x128xf32>
    %cst_55 = arith.constant 8.000000e-01 : f32
    %104 = vector.broadcast %cst_55 : f32 to vector<8x128xf32>
    %105 = arith.mulf %104, %96 : vector<8x128xf32>
    %106 = vector.extract_strided_slice %103 {offsets = [0, 96], sizes = [8, 32], strides = [1, 1]} : vector<8x128xf32> to vector<8x32xf32>
    %107 = arith.addf %91, %106 : vector<8x32xf32>
    %cst_56 = arith.constant 0.899999976 : f32
    %108 = vector.broadcast %cst_56 : f32 to vector<8x32xf32>
    %109 = arith.mulf %108, %89 : vector<8x32xf32>
    %cst_57 = arith.constant 5.000000e-03 : f32
    %110 = vector.broadcast %cst_57 : f32 to vector<8x32xf32>
    %111 = arith.addf %109, %110 : vector<8x32xf32>
    %cst_58 = arith.constant 1.000000e-01 : f32
    %112 = vector.broadcast %cst_58 : f32 to vector<8x32xf32>
    %113 = arith.mulf %112, %107 : vector<8x32xf32>
    %114 = arith.addf %111, %113 : vector<8x32xf32>
    %cst_59 = arith.constant 8.000000e-01 : f32
    %115 = vector.broadcast %cst_59 : f32 to vector<8x32xf32>
    %116 = arith.mulf %115, %107 : vector<8x32xf32>
    %c3 = arith.constant 3 : index
    %c0_60 = arith.constant 0 : index
    %c0_61 = arith.constant 0 : index
    %117 = vector.load %arg4[%c3, %c0_60, %c0_61] : memref<16x8x32xf32, #tpu.memory_space<vmem>>, vector<1x8x32xf32>
    %118 = vector.shape_cast %117 : vector<1x8x32xf32> to vector<8x32xf32>
    %119 = vector.shape_cast %114 : vector<8x32xf32> to vector<1x8x32xf32>
    tpu.vector_store %arg4[%c3, %c0_60, %c0_61], %119 {strides = array<i32>} : memref<16x8x32xf32, #tpu.memory_space<vmem>>, vector<1x8x32xf32>,
    %c32 = arith.constant 32 : index
    %c0_62 = arith.constant 0 : index
    %120 = vector.load %arg7[%c32, %c0_62] : memref<128x128xf32, #tpu.memory_space<vmem>>, vector<8x128xf32>
    %121 = arith.addf %105, %120 : vector<8x128xf32>
    %cst_63 = arith.constant 0.899999976 : f32
    %122 = vector.broadcast %cst_63 : f32 to vector<8x128xf32>
    %123 = arith.mulf %122, %103 : vector<8x128xf32>
    %124 = vector.broadcast %11 : vector<1x128xf32> to vector<8x128xf32>
    %125 = arith.addf %123, %124 : vector<8x128xf32>
    %cst_64 = arith.constant 1.000000e-01 : f32
    %126 = vector.broadcast %cst_64 : f32 to vector<8x128xf32>
    %127 = arith.mulf %126, %121 : vector<8x128xf32>
    %128 = arith.addf %125, %127 : vector<8x128xf32>
    %cst_65 = arith.constant 8.000000e-01 : f32
    %129 = vector.broadcast %cst_65 : f32 to vector<8x128xf32>
    %130 = arith.mulf %129, %121 : vector<8x128xf32>
    %131 = vector.extract_strided_slice %128 {offsets = [0, 96], sizes = [8, 32], strides = [1, 1]} : vector<8x128xf32> to vector<8x32xf32>
    %132 = arith.addf %116, %131 : vector<8x32xf32>
    %cst_66 = arith.constant 0.899999976 : f32
    %133 = vector.broadcast %cst_66 : f32 to vector<8x32xf32>
    %134 = arith.mulf %133, %114 : vector<8x32xf32>
    %cst_67 = arith.constant 5.000000e-03 : f32
    %135 = vector.broadcast %cst_67 : f32 to vector<8x32xf32>
    %136 = arith.addf %134, %135 : vector<8x32xf32>
    %cst_68 = arith.constant 1.000000e-01 : f32
    %137 = vector.broadcast %cst_68 : f32 to vector<8x32xf32>
    %138 = arith.mulf %137, %132 : vector<8x32xf32>
    %139 = arith.addf %136, %138 : vector<8x32xf32>
    %cst_69 = arith.constant 8.000000e-01 : f32
    %140 = vector.broadcast %cst_69 : f32 to vector<8x32xf32>
    %141 = arith.mulf %140, %132 : vector<8x32xf32>
    %c4 = arith.constant 4 : index
    %c0_70 = arith.constant 0 : index
    %c0_71 = arith.constant 0 : index
    %142 = vector.load %arg4[%c4, %c0_70, %c0_71] : memref<16x8x32xf32, #tpu.memory_space<vmem>>, vector<1x8x32xf32>
    %143 = vector.shape_cast %142 : vector<1x8x32xf32> to vector<8x32xf32>
    %144 = vector.shape_cast %139 : vector<8x32xf32> to vector<1x8x32xf32>
    tpu.vector_store %arg4[%c4, %c0_70, %c0_71], %144 {strides = array<i32>} : memref<16x8x32xf32, #tpu.memory_space<vmem>>, vector<1x8x32xf32>,
    %c40 = arith.constant 40 : index
    %c0_72 = arith.constant 0 : index
    %145 = vector.load %arg7[%c40, %c0_72] : memref<128x128xf32, #tpu.memory_space<vmem>>, vector<8x128xf32>
    %146 = arith.addf %130, %145 : vector<8x128xf32>
    %cst_73 = arith.constant 0.899999976 : f32
    %147 = vector.broadcast %cst_73 : f32 to vector<8x128xf32>
    %148 = arith.mulf %147, %128 : vector<8x128xf32>
    %149 = vector.broadcast %11 : vector<1x128xf32> to vector<8x128xf32>
    %150 = arith.addf %148, %149 : vector<8x128xf32>
    %cst_74 = arith.constant 1.000000e-01 : f32
    %151 = vector.broadcast %cst_74 : f32 to vector<8x128xf32>
    %152 = arith.mulf %151, %146 : vector<8x128xf32>
    %153 = arith.addf %150, %152 : vector<8x128xf32>
    %cst_75 = arith.constant 8.000000e-01 : f32
    %154 = vector.broadcast %cst_75 : f32 to vector<8x128xf32>
    %155 = arith.mulf %154, %146 : vector<8x128xf32>
    %156 = vector.extract_strided_slice %153 {offsets = [0, 96], sizes = [8, 32], strides = [1, 1]} : vector<8x128xf32> to vector<8x32xf32>
    %157 = arith.addf %141, %156 : vector<8x32xf32>
    %cst_76 = arith.constant 0.899999976 : f32
    %158 = vector.broadcast %cst_76 : f32 to vector<8x32xf32>
    %159 = arith.mulf %158, %139 : vector<8x32xf32>
    %cst_77 = arith.constant 5.000000e-03 : f32
    %160 = vector.broadcast %cst_77 : f32 to vector<8x32xf32>
    %161 = arith.addf %159, %160 : vector<8x32xf32>
    %cst_78 = arith.constant 1.000000e-01 : f32
    %162 = vector.broadcast %cst_78 : f32 to vector<8x32xf32>
    %163 = arith.mulf %162, %157 : vector<8x32xf32>
    %164 = arith.addf %161, %163 : vector<8x32xf32>
    %cst_79 = arith.constant 8.000000e-01 : f32
    %165 = vector.broadcast %cst_79 : f32 to vector<8x32xf32>
    %166 = arith.mulf %165, %157 : vector<8x32xf32>
    %c5 = arith.constant 5 : index
    %c0_80 = arith.constant 0 : index
    %c0_81 = arith.constant 0 : index
    %167 = vector.load %arg4[%c5, %c0_80, %c0_81] : memref<16x8x32xf32, #tpu.memory_space<vmem>>, vector<1x8x32xf32>
    %168 = vector.shape_cast %167 : vector<1x8x32xf32> to vector<8x32xf32>
    %169 = vector.shape_cast %164 : vector<8x32xf32> to vector<1x8x32xf32>
    tpu.vector_store %arg4[%c5, %c0_80, %c0_81], %169 {strides = array<i32>} : memref<16x8x32xf32, #tpu.memory_space<vmem>>, vector<1x8x32xf32>,
    %c48 = arith.constant 48 : index
    %c0_82 = arith.constant 0 : index
    %170 = vector.load %arg7[%c48, %c0_82] : memref<128x128xf32, #tpu.memory_space<vmem>>, vector<8x128xf32>
    %171 = arith.addf %155, %170 : vector<8x128xf32>
    %cst_83 = arith.constant 0.899999976 : f32
    %172 = vector.broadcast %cst_83 : f32 to vector<8x128xf32>
    %173 = arith.mulf %172, %153 : vector<8x128xf32>
    %174 = vector.broadcast %11 : vector<1x128xf32> to vector<8x128xf32>
    %175 = arith.addf %173, %174 : vector<8x128xf32>
    %cst_84 = arith.constant 1.000000e-01 : f32
    %176 = vector.broadcast %cst_84 : f32 to vector<8x128xf32>
    %177 = arith.mulf %176, %171 : vector<8x128xf32>
    %178 = arith.addf %175, %177 : vector<8x128xf32>
    %cst_85 = arith.constant 8.000000e-01 : f32
    %179 = vector.broadcast %cst_85 : f32 to vector<8x128xf32>
    %180 = arith.mulf %179, %171 : vector<8x128xf32>
    %181 = vector.extract_strided_slice %178 {offsets = [0, 96], sizes = [8, 32], strides = [1, 1]} : vector<8x128xf32> to vector<8x32xf32>
    %182 = arith.addf %166, %181 : vector<8x32xf32>
    %cst_86 = arith.constant 0.899999976 : f32
    %183 = vector.broadcast %cst_86 : f32 to vector<8x32xf32>
    %184 = arith.mulf %183, %164 : vector<8x32xf32>
    %cst_87 = arith.constant 5.000000e-03 : f32
    %185 = vector.broadcast %cst_87 : f32 to vector<8x32xf32>
    %186 = arith.addf %184, %185 : vector<8x32xf32>
    %cst_88 = arith.constant 1.000000e-01 : f32
    %187 = vector.broadcast %cst_88 : f32 to vector<8x32xf32>
    %188 = arith.mulf %187, %182 : vector<8x32xf32>
    %189 = arith.addf %186, %188 : vector<8x32xf32>
    %cst_89 = arith.constant 8.000000e-01 : f32
    %190 = vector.broadcast %cst_89 : f32 to vector<8x32xf32>
    %191 = arith.mulf %190, %182 : vector<8x32xf32>
    %c6 = arith.constant 6 : index
    %c0_90 = arith.constant 0 : index
    %c0_91 = arith.constant 0 : index
    %192 = vector.load %arg4[%c6, %c0_90, %c0_91] : memref<16x8x32xf32, #tpu.memory_space<vmem>>, vector<1x8x32xf32>
    %193 = vector.shape_cast %192 : vector<1x8x32xf32> to vector<8x32xf32>
    %194 = vector.shape_cast %189 : vector<8x32xf32> to vector<1x8x32xf32>
    tpu.vector_store %arg4[%c6, %c0_90, %c0_91], %194 {strides = array<i32>} : memref<16x8x32xf32, #tpu.memory_space<vmem>>, vector<1x8x32xf32>,
    %c56 = arith.constant 56 : index
    %c0_92 = arith.constant 0 : index
    %195 = vector.load %arg7[%c56, %c0_92] : memref<128x128xf32, #tpu.memory_space<vmem>>, vector<8x128xf32>
    %196 = arith.addf %180, %195 : vector<8x128xf32>
    %cst_93 = arith.constant 0.899999976 : f32
    %197 = vector.broadcast %cst_93 : f32 to vector<8x128xf32>
    %198 = arith.mulf %197, %178 : vector<8x128xf32>
    %199 = vector.broadcast %11 : vector<1x128xf32> to vector<8x128xf32>
    %200 = arith.addf %198, %199 : vector<8x128xf32>
    %cst_94 = arith.constant 1.000000e-01 : f32
    %201 = vector.broadcast %cst_94 : f32 to vector<8x128xf32>
    %202 = arith.mulf %201, %196 : vector<8x128xf32>
    %203 = arith.addf %200, %202 : vector<8x128xf32>
    %cst_95 = arith.constant 8.000000e-01 : f32
    %204 = vector.broadcast %cst_95 : f32 to vector<8x128xf32>
    %205 = arith.mulf %204, %196 : vector<8x128xf32>
    %206 = vector.extract_strided_slice %203 {offsets = [0, 96], sizes = [8, 32], strides = [1, 1]} : vector<8x128xf32> to vector<8x32xf32>
    %207 = arith.addf %191, %206 : vector<8x32xf32>
    %cst_96 = arith.constant 0.899999976 : f32
    %208 = vector.broadcast %cst_96 : f32 to vector<8x32xf32>
    %209 = arith.mulf %208, %189 : vector<8x32xf32>
    %cst_97 = arith.constant 5.000000e-03 : f32
    %210 = vector.broadcast %cst_97 : f32 to vector<8x32xf32>
    %211 = arith.addf %209, %210 : vector<8x32xf32>
    %cst_98 = arith.constant 1.000000e-01 : f32
    %212 = vector.broadcast %cst_98 : f32 to vector<8x32xf32>
    %213 = arith.mulf %212, %207 : vector<8x32xf32>
    %214 = arith.addf %211, %213 : vector<8x32xf32>
    %cst_99 = arith.constant 8.000000e-01 : f32
    %215 = vector.broadcast %cst_99 : f32 to vector<8x32xf32>
    %216 = arith.mulf %215, %207 : vector<8x32xf32>
    %c7 = arith.constant 7 : index
    %c0_100 = arith.constant 0 : index
    %c0_101 = arith.constant 0 : index
    %217 = vector.load %arg4[%c7, %c0_100, %c0_101] : memref<16x8x32xf32, #tpu.memory_space<vmem>>, vector<1x8x32xf32>
    %218 = vector.shape_cast %217 : vector<1x8x32xf32> to vector<8x32xf32>
    %219 = vector.shape_cast %214 : vector<8x32xf32> to vector<1x8x32xf32>
    tpu.vector_store %arg4[%c7, %c0_100, %c0_101], %219 {strides = array<i32>} : memref<16x8x32xf32, #tpu.memory_space<vmem>>, vector<1x8x32xf32>,
    %c64 = arith.constant 64 : index
    %c0_102 = arith.constant 0 : index
    %220 = vector.load %arg7[%c64, %c0_102] : memref<128x128xf32, #tpu.memory_space<vmem>>, vector<8x128xf32>
    %221 = arith.addf %205, %220 : vector<8x128xf32>
    %cst_103 = arith.constant 0.899999976 : f32
    %222 = vector.broadcast %cst_103 : f32 to vector<8x128xf32>
    %223 = arith.mulf %222, %203 : vector<8x128xf32>
    %224 = vector.broadcast %11 : vector<1x128xf32> to vector<8x128xf32>
    %225 = arith.addf %223, %224 : vector<8x128xf32>
    %cst_104 = arith.constant 1.000000e-01 : f32
    %226 = vector.broadcast %cst_104 : f32 to vector<8x128xf32>
    %227 = arith.mulf %226, %221 : vector<8x128xf32>
    %228 = arith.addf %225, %227 : vector<8x128xf32>
    %cst_105 = arith.constant 8.000000e-01 : f32
    %229 = vector.broadcast %cst_105 : f32 to vector<8x128xf32>
    %230 = arith.mulf %229, %221 : vector<8x128xf32>
    %231 = vector.extract_strided_slice %228 {offsets = [0, 96], sizes = [8, 32], strides = [1, 1]} : vector<8x128xf32> to vector<8x32xf32>
    %232 = arith.addf %216, %231 : vector<8x32xf32>
    %cst_106 = arith.constant 0.899999976 : f32
    %233 = vector.broadcast %cst_106 : f32 to vector<8x32xf32>
    %234 = arith.mulf %233, %214 : vector<8x32xf32>
    %cst_107 = arith.constant 5.000000e-03 : f32
    %235 = vector.broadcast %cst_107 : f32 to vector<8x32xf32>
    %236 = arith.addf %234, %235 : vector<8x32xf32>
    %cst_108 = arith.constant 1.000000e-01 : f32
    %237 = vector.broadcast %cst_108 : f32 to vector<8x32xf32>
    %238 = arith.mulf %237, %232 : vector<8x32xf32>
    %239 = arith.addf %236, %238 : vector<8x32xf32>
    %cst_109 = arith.constant 8.000000e-01 : f32
    %240 = vector.broadcast %cst_109 : f32 to vector<8x32xf32>
    %241 = arith.mulf %240, %232 : vector<8x32xf32>
    %c8_110 = arith.constant 8 : index
    %c0_111 = arith.constant 0 : index
    %c0_112 = arith.constant 0 : index
    %242 = vector.load %arg4[%c8_110, %c0_111, %c0_112] : memref<16x8x32xf32, #tpu.memory_space<vmem>>, vector<1x8x32xf32>
    %243 = vector.shape_cast %242 : vector<1x8x32xf32> to vector<8x32xf32>
    %244 = vector.shape_cast %239 : vector<8x32xf32> to vector<1x8x32xf32>
    tpu.vector_store %arg4[%c8_110, %c0_111, %c0_112], %244 {strides = array<i32>} : memref<16x8x32xf32, #tpu.memory_space<vmem>>, vector<1x8x32xf32>,
    %c72 = arith.constant 72 : index
    %c0_113 = arith.constant 0 : index
    %245 = vector.load %arg7[%c72, %c0_113] : memref<128x128xf32, #tpu.memory_space<vmem>>, vector<8x128xf32>
    %246 = arith.addf %230, %245 : vector<8x128xf32>
    %cst_114 = arith.constant 0.899999976 : f32
    %247 = vector.broadcast %cst_114 : f32 to vector<8x128xf32>
    %248 = arith.mulf %247, %228 : vector<8x128xf32>
    %249 = vector.broadcast %11 : vector<1x128xf32> to vector<8x128xf32>
    %250 = arith.addf %248, %249 : vector<8x128xf32>
    %cst_115 = arith.constant 1.000000e-01 : f32
    %251 = vector.broadcast %cst_115 : f32 to vector<8x128xf32>
    %252 = arith.mulf %251, %246 : vector<8x128xf32>
    %253 = arith.addf %250, %252 : vector<8x128xf32>
    %cst_116 = arith.constant 8.000000e-01 : f32
    %254 = vector.broadcast %cst_116 : f32 to vector<8x128xf32>
    %255 = arith.mulf %254, %246 : vector<8x128xf32>
    %256 = vector.extract_strided_slice %253 {offsets = [0, 96], sizes = [8, 32], strides = [1, 1]} : vector<8x128xf32> to vector<8x32xf32>
    %257 = arith.addf %241, %256 : vector<8x32xf32>
    %cst_117 = arith.constant 0.899999976 : f32
    %258 = vector.broadcast %cst_117 : f32 to vector<8x32xf32>
    %259 = arith.mulf %258, %239 : vector<8x32xf32>
    %cst_118 = arith.constant 5.000000e-03 : f32
    %260 = vector.broadcast %cst_118 : f32 to vector<8x32xf32>
    %261 = arith.addf %259, %260 : vector<8x32xf32>
    %cst_119 = arith.constant 1.000000e-01 : f32
    %262 = vector.broadcast %cst_119 : f32 to vector<8x32xf32>
    %263 = arith.mulf %262, %257 : vector<8x32xf32>
    %264 = arith.addf %261, %263 : vector<8x32xf32>
    %cst_120 = arith.constant 8.000000e-01 : f32
    %265 = vector.broadcast %cst_120 : f32 to vector<8x32xf32>
    %266 = arith.mulf %265, %257 : vector<8x32xf32>
    %c9 = arith.constant 9 : index
    %c0_121 = arith.constant 0 : index
    %c0_122 = arith.constant 0 : index
    %267 = vector.load %arg4[%c9, %c0_121, %c0_122] : memref<16x8x32xf32, #tpu.memory_space<vmem>>, vector<1x8x32xf32>
    %268 = vector.shape_cast %267 : vector<1x8x32xf32> to vector<8x32xf32>
    %269 = vector.shape_cast %264 : vector<8x32xf32> to vector<1x8x32xf32>
    tpu.vector_store %arg4[%c9, %c0_121, %c0_122], %269 {strides = array<i32>} : memref<16x8x32xf32, #tpu.memory_space<vmem>>, vector<1x8x32xf32>,
    %c80 = arith.constant 80 : index
    %c0_123 = arith.constant 0 : index
    %270 = vector.load %arg7[%c80, %c0_123] : memref<128x128xf32, #tpu.memory_space<vmem>>, vector<8x128xf32>
    %271 = arith.addf %255, %270 : vector<8x128xf32>
    %cst_124 = arith.constant 0.899999976 : f32
    %272 = vector.broadcast %cst_124 : f32 to vector<8x128xf32>
    %273 = arith.mulf %272, %253 : vector<8x128xf32>
    %274 = vector.broadcast %11 : vector<1x128xf32> to vector<8x128xf32>
    %275 = arith.addf %273, %274 : vector<8x128xf32>
    %cst_125 = arith.constant 1.000000e-01 : f32
    %276 = vector.broadcast %cst_125 : f32 to vector<8x128xf32>
    %277 = arith.mulf %276, %271 : vector<8x128xf32>
    %278 = arith.addf %275, %277 : vector<8x128xf32>
    %cst_126 = arith.constant 8.000000e-01 : f32
    %279 = vector.broadcast %cst_126 : f32 to vector<8x128xf32>
    %280 = arith.mulf %279, %271 : vector<8x128xf32>
    %281 = vector.extract_strided_slice %278 {offsets = [0, 96], sizes = [8, 32], strides = [1, 1]} : vector<8x128xf32> to vector<8x32xf32>
    %282 = arith.addf %266, %281 : vector<8x32xf32>
    %cst_127 = arith.constant 0.899999976 : f32
    %283 = vector.broadcast %cst_127 : f32 to vector<8x32xf32>
    %284 = arith.mulf %283, %264 : vector<8x32xf32>
    %cst_128 = arith.constant 5.000000e-03 : f32
    %285 = vector.broadcast %cst_128 : f32 to vector<8x32xf32>
    %286 = arith.addf %284, %285 : vector<8x32xf32>
    %cst_129 = arith.constant 1.000000e-01 : f32
    %287 = vector.broadcast %cst_129 : f32 to vector<8x32xf32>
    %288 = arith.mulf %287, %282 : vector<8x32xf32>
    %289 = arith.addf %286, %288 : vector<8x32xf32>
    %cst_130 = arith.constant 8.000000e-01 : f32
    %290 = vector.broadcast %cst_130 : f32 to vector<8x32xf32>
    %291 = arith.mulf %290, %282 : vector<8x32xf32>
    %c10 = arith.constant 10 : index
    %c0_131 = arith.constant 0 : index
    %c0_132 = arith.constant 0 : index
    %292 = vector.load %arg4[%c10, %c0_131, %c0_132] : memref<16x8x32xf32, #tpu.memory_space<vmem>>, vector<1x8x32xf32>
    %293 = vector.shape_cast %292 : vector<1x8x32xf32> to vector<8x32xf32>
    %294 = vector.shape_cast %289 : vector<8x32xf32> to vector<1x8x32xf32>
    tpu.vector_store %arg4[%c10, %c0_131, %c0_132], %294 {strides = array<i32>} : memref<16x8x32xf32, #tpu.memory_space<vmem>>, vector<1x8x32xf32>,
    %c88 = arith.constant 88 : index
    %c0_133 = arith.constant 0 : index
    %295 = vector.load %arg7[%c88, %c0_133] : memref<128x128xf32, #tpu.memory_space<vmem>>, vector<8x128xf32>
    %296 = arith.addf %280, %295 : vector<8x128xf32>
    %cst_134 = arith.constant 0.899999976 : f32
    %297 = vector.broadcast %cst_134 : f32 to vector<8x128xf32>
    %298 = arith.mulf %297, %278 : vector<8x128xf32>
    %299 = vector.broadcast %11 : vector<1x128xf32> to vector<8x128xf32>
    %300 = arith.addf %298, %299 : vector<8x128xf32>
    %cst_135 = arith.constant 1.000000e-01 : f32
    %301 = vector.broadcast %cst_135 : f32 to vector<8x128xf32>
    %302 = arith.mulf %301, %296 : vector<8x128xf32>
    %303 = arith.addf %300, %302 : vector<8x128xf32>
    %cst_136 = arith.constant 8.000000e-01 : f32
    %304 = vector.broadcast %cst_136 : f32 to vector<8x128xf32>
    %305 = arith.mulf %304, %296 : vector<8x128xf32>
    %306 = vector.extract_strided_slice %303 {offsets = [0, 96], sizes = [8, 32], strides = [1, 1]} : vector<8x128xf32> to vector<8x32xf32>
    %307 = arith.addf %291, %306 : vector<8x32xf32>
    %cst_137 = arith.constant 0.899999976 : f32
    %308 = vector.broadcast %cst_137 : f32 to vector<8x32xf32>
    %309 = arith.mulf %308, %289 : vector<8x32xf32>
    %cst_138 = arith.constant 5.000000e-03 : f32
    %310 = vector.broadcast %cst_138 : f32 to vector<8x32xf32>
    %311 = arith.addf %309, %310 : vector<8x32xf32>
    %cst_139 = arith.constant 1.000000e-01 : f32
    %312 = vector.broadcast %cst_139 : f32 to vector<8x32xf32>
    %313 = arith.mulf %312, %307 : vector<8x32xf32>
    %314 = arith.addf %311, %313 : vector<8x32xf32>
    %cst_140 = arith.constant 8.000000e-01 : f32
    %315 = vector.broadcast %cst_140 : f32 to vector<8x32xf32>
    %316 = arith.mulf %315, %307 : vector<8x32xf32>
    %c11 = arith.constant 11 : index
    %c0_141 = arith.constant 0 : index
    %c0_142 = arith.constant 0 : index
    %317 = vector.load %arg4[%c11, %c0_141, %c0_142] : memref<16x8x32xf32, #tpu.memory_space<vmem>>, vector<1x8x32xf32>
    %318 = vector.shape_cast %317 : vector<1x8x32xf32> to vector<8x32xf32>
    %319 = vector.shape_cast %314 : vector<8x32xf32> to vector<1x8x32xf32>
    tpu.vector_store %arg4[%c11, %c0_141, %c0_142], %319 {strides = array<i32>} : memref<16x8x32xf32, #tpu.memory_space<vmem>>, vector<1x8x32xf32>,
    %c96 = arith.constant 96 : index
    %c0_143 = arith.constant 0 : index
    %320 = vector.load %arg7[%c96, %c0_143] : memref<128x128xf32, #tpu.memory_space<vmem>>, vector<8x128xf32>
    %321 = arith.addf %305, %320 : vector<8x128xf32>
    %cst_144 = arith.constant 0.899999976 : f32
    %322 = vector.broadcast %cst_144 : f32 to vector<8x128xf32>
    %323 = arith.mulf %322, %303 : vector<8x128xf32>
    %324 = vector.broadcast %11 : vector<1x128xf32> to vector<8x128xf32>
    %325 = arith.addf %323, %324 : vector<8x128xf32>
    %cst_145 = arith.constant 1.000000e-01 : f32
    %326 = vector.broadcast %cst_145 : f32 to vector<8x128xf32>
    %327 = arith.mulf %326, %321 : vector<8x128xf32>
    %328 = arith.addf %325, %327 : vector<8x128xf32>
    %cst_146 = arith.constant 8.000000e-01 : f32
    %329 = vector.broadcast %cst_146 : f32 to vector<8x128xf32>
    %330 = arith.mulf %329, %321 : vector<8x128xf32>
    %331 = vector.extract_strided_slice %328 {offsets = [0, 96], sizes = [8, 32], strides = [1, 1]} : vector<8x128xf32> to vector<8x32xf32>
    %332 = arith.addf %316, %331 : vector<8x32xf32>
    %cst_147 = arith.constant 0.899999976 : f32
    %333 = vector.broadcast %cst_147 : f32 to vector<8x32xf32>
    %334 = arith.mulf %333, %314 : vector<8x32xf32>
    %cst_148 = arith.constant 5.000000e-03 : f32
    %335 = vector.broadcast %cst_148 : f32 to vector<8x32xf32>
    %336 = arith.addf %334, %335 : vector<8x32xf32>
    %cst_149 = arith.constant 1.000000e-01 : f32
    %337 = vector.broadcast %cst_149 : f32 to vector<8x32xf32>
    %338 = arith.mulf %337, %332 : vector<8x32xf32>
    %339 = arith.addf %336, %338 : vector<8x32xf32>
    %cst_150 = arith.constant 8.000000e-01 : f32
    %340 = vector.broadcast %cst_150 : f32 to vector<8x32xf32>
    %341 = arith.mulf %340, %332 : vector<8x32xf32>
    %c12 = arith.constant 12 : index
    %c0_151 = arith.constant 0 : index
    %c0_152 = arith.constant 0 : index
    %342 = vector.load %arg4[%c12, %c0_151, %c0_152] : memref<16x8x32xf32, #tpu.memory_space<vmem>>, vector<1x8x32xf32>
    %343 = vector.shape_cast %342 : vector<1x8x32xf32> to vector<8x32xf32>
    %344 = vector.shape_cast %339 : vector<8x32xf32> to vector<1x8x32xf32>
    tpu.vector_store %arg4[%c12, %c0_151, %c0_152], %344 {strides = array<i32>} : memref<16x8x32xf32, #tpu.memory_space<vmem>>, vector<1x8x32xf32>,
    %c104 = arith.constant 104 : index
    %c0_153 = arith.constant 0 : index
    %345 = vector.load %arg7[%c104, %c0_153] : memref<128x128xf32, #tpu.memory_space<vmem>>, vector<8x128xf32>
    %346 = arith.addf %330, %345 : vector<8x128xf32>
    %cst_154 = arith.constant 0.899999976 : f32
    %347 = vector.broadcast %cst_154 : f32 to vector<8x128xf32>
    %348 = arith.mulf %347, %328 : vector<8x128xf32>
    %349 = vector.broadcast %11 : vector<1x128xf32> to vector<8x128xf32>
    %350 = arith.addf %348, %349 : vector<8x128xf32>
    %cst_155 = arith.constant 1.000000e-01 : f32
    %351 = vector.broadcast %cst_155 : f32 to vector<8x128xf32>
    %352 = arith.mulf %351, %346 : vector<8x128xf32>
    %353 = arith.addf %350, %352 : vector<8x128xf32>
    %cst_156 = arith.constant 8.000000e-01 : f32
    %354 = vector.broadcast %cst_156 : f32 to vector<8x128xf32>
    %355 = arith.mulf %354, %346 : vector<8x128xf32>
    %356 = vector.extract_strided_slice %353 {offsets = [0, 96], sizes = [8, 32], strides = [1, 1]} : vector<8x128xf32> to vector<8x32xf32>
    %357 = arith.addf %341, %356 : vector<8x32xf32>
    %cst_157 = arith.constant 0.899999976 : f32
    %358 = vector.broadcast %cst_157 : f32 to vector<8x32xf32>
    %359 = arith.mulf %358, %339 : vector<8x32xf32>
    %cst_158 = arith.constant 5.000000e-03 : f32
    %360 = vector.broadcast %cst_158 : f32 to vector<8x32xf32>
    %361 = arith.addf %359, %360 : vector<8x32xf32>
    %cst_159 = arith.constant 1.000000e-01 : f32
    %362 = vector.broadcast %cst_159 : f32 to vector<8x32xf32>
    %363 = arith.mulf %362, %357 : vector<8x32xf32>
    %364 = arith.addf %361, %363 : vector<8x32xf32>
    %cst_160 = arith.constant 8.000000e-01 : f32
    %365 = vector.broadcast %cst_160 : f32 to vector<8x32xf32>
    %366 = arith.mulf %365, %357 : vector<8x32xf32>
    %c13 = arith.constant 13 : index
    %c0_161 = arith.constant 0 : index
    %c0_162 = arith.constant 0 : index
    %367 = vector.load %arg4[%c13, %c0_161, %c0_162] : memref<16x8x32xf32, #tpu.memory_space<vmem>>, vector<1x8x32xf32>
    %368 = vector.shape_cast %367 : vector<1x8x32xf32> to vector<8x32xf32>
    %369 = vector.shape_cast %364 : vector<8x32xf32> to vector<1x8x32xf32>
    tpu.vector_store %arg4[%c13, %c0_161, %c0_162], %369 {strides = array<i32>} : memref<16x8x32xf32, #tpu.memory_space<vmem>>, vector<1x8x32xf32>,
    %c112 = arith.constant 112 : index
    %c0_163 = arith.constant 0 : index
    %370 = vector.load %arg7[%c112, %c0_163] : memref<128x128xf32, #tpu.memory_space<vmem>>, vector<8x128xf32>
    %371 = arith.addf %355, %370 : vector<8x128xf32>
    %cst_164 = arith.constant 0.899999976 : f32
    %372 = vector.broadcast %cst_164 : f32 to vector<8x128xf32>
    %373 = arith.mulf %372, %353 : vector<8x128xf32>
    %374 = vector.broadcast %11 : vector<1x128xf32> to vector<8x128xf32>
    %375 = arith.addf %373, %374 : vector<8x128xf32>
    %cst_165 = arith.constant 1.000000e-01 : f32
    %376 = vector.broadcast %cst_165 : f32 to vector<8x128xf32>
    %377 = arith.mulf %376, %371 : vector<8x128xf32>
    %378 = arith.addf %375, %377 : vector<8x128xf32>
    %cst_166 = arith.constant 8.000000e-01 : f32
    %379 = vector.broadcast %cst_166 : f32 to vector<8x128xf32>
    %380 = arith.mulf %379, %371 : vector<8x128xf32>
    %381 = vector.extract_strided_slice %378 {offsets = [0, 96], sizes = [8, 32], strides = [1, 1]} : vector<8x128xf32> to vector<8x32xf32>
    %382 = arith.addf %366, %381 : vector<8x32xf32>
    %cst_167 = arith.constant 0.899999976 : f32
    %383 = vector.broadcast %cst_167 : f32 to vector<8x32xf32>
    %384 = arith.mulf %383, %364 : vector<8x32xf32>
    %cst_168 = arith.constant 5.000000e-03 : f32
    %385 = vector.broadcast %cst_168 : f32 to vector<8x32xf32>
    %386 = arith.addf %384, %385 : vector<8x32xf32>
    %cst_169 = arith.constant 1.000000e-01 : f32
    %387 = vector.broadcast %cst_169 : f32 to vector<8x32xf32>
    %388 = arith.mulf %387, %382 : vector<8x32xf32>
    %389 = arith.addf %386, %388 : vector<8x32xf32>
    %cst_170 = arith.constant 8.000000e-01 : f32
    %390 = vector.broadcast %cst_170 : f32 to vector<8x32xf32>
    %391 = arith.mulf %390, %382 : vector<8x32xf32>
    %c14 = arith.constant 14 : index
    %c0_171 = arith.constant 0 : index
    %c0_172 = arith.constant 0 : index
    %392 = vector.load %arg4[%c14, %c0_171, %c0_172] : memref<16x8x32xf32, #tpu.memory_space<vmem>>, vector<1x8x32xf32>
    %393 = vector.shape_cast %392 : vector<1x8x32xf32> to vector<8x32xf32>
    %394 = vector.shape_cast %389 : vector<8x32xf32> to vector<1x8x32xf32>
    tpu.vector_store %arg4[%c14, %c0_171, %c0_172], %394 {strides = array<i32>} : memref<16x8x32xf32, #tpu.memory_space<vmem>>, vector<1x8x32xf32>,
    %c120 = arith.constant 120 : index
    %c0_173 = arith.constant 0 : index
    %395 = vector.load %arg7[%c120, %c0_173] : memref<128x128xf32, #tpu.memory_space<vmem>>, vector<8x128xf32>
    %396 = arith.addf %380, %395 : vector<8x128xf32>
    %cst_174 = arith.constant 0.899999976 : f32
    %397 = vector.broadcast %cst_174 : f32 to vector<8x128xf32>
    %398 = arith.mulf %397, %378 : vector<8x128xf32>
    %399 = vector.broadcast %11 : vector<1x128xf32> to vector<8x128xf32>
    %400 = arith.addf %398, %399 : vector<8x128xf32>
    %cst_175 = arith.constant 1.000000e-01 : f32
    %401 = vector.broadcast %cst_175 : f32 to vector<8x128xf32>
    %402 = arith.mulf %401, %396 : vector<8x128xf32>
    %403 = arith.addf %400, %402 : vector<8x128xf32>
    %cst_176 = arith.constant 8.000000e-01 : f32
    %404 = vector.broadcast %cst_176 : f32 to vector<8x128xf32>
    %405 = arith.mulf %404, %396 : vector<8x128xf32>
    %406 = vector.extract_strided_slice %403 {offsets = [0, 96], sizes = [8, 32], strides = [1, 1]} : vector<8x128xf32> to vector<8x32xf32>
    %407 = arith.addf %391, %406 : vector<8x32xf32>
    %cst_177 = arith.constant 0.899999976 : f32
    %408 = vector.broadcast %cst_177 : f32 to vector<8x32xf32>
    %409 = arith.mulf %408, %389 : vector<8x32xf32>
    %cst_178 = arith.constant 5.000000e-03 : f32
    %410 = vector.broadcast %cst_178 : f32 to vector<8x32xf32>
    %411 = arith.addf %409, %410 : vector<8x32xf32>
    %cst_179 = arith.constant 1.000000e-01 : f32
    %412 = vector.broadcast %cst_179 : f32 to vector<8x32xf32>
    %413 = arith.mulf %412, %407 : vector<8x32xf32>
    %414 = arith.addf %411, %413 : vector<8x32xf32>
    %cst_180 = arith.constant 8.000000e-01 : f32
    %415 = vector.broadcast %cst_180 : f32 to vector<8x32xf32>
    %416 = arith.mulf %415, %407 : vector<8x32xf32>
    %c15 = arith.constant 15 : index
    %c0_181 = arith.constant 0 : index
    %c0_182 = arith.constant 0 : index
    %417 = vector.load %arg4[%c15, %c0_181, %c0_182] : memref<16x8x32xf32, #tpu.memory_space<vmem>>, vector<1x8x32xf32>
    %418 = vector.shape_cast %417 : vector<1x8x32xf32> to vector<8x32xf32>
    %419 = vector.shape_cast %414 : vector<8x32xf32> to vector<1x8x32xf32>
    tpu.vector_store %arg4[%c15, %c0_181, %c0_182], %419 {strides = array<i32>} : memref<16x8x32xf32, #tpu.memory_space<vmem>>, vector<1x8x32xf32>,
    %c0_183 = arith.constant 0 : index
    %c0_184 = arith.constant 0 : index
    %c0_185 = arith.constant 0 : index
    %420 = vector.load %arg5[%c0_183, %c0_184, %c0_185] : memref<2x8x128xf32, #tpu.memory_space<vmem>>, vector<1x8x128xf32>
    %421 = vector.shape_cast %420 : vector<1x8x128xf32> to vector<8x128xf32>
    %422 = vector.shape_cast %403 : vector<8x128xf32> to vector<1x8x128xf32>
    tpu.vector_store %arg5[%c0_183, %c0_184, %c0_185], %422 {strides = array<i32>} : memref<2x8x128xf32, #tpu.memory_space<vmem>>, vector<1x8x128xf32>,
    %c1_186 = arith.constant 1 : index
    %c0_187 = arith.constant 0 : index
    %c0_188 = arith.constant 0 : index
    %423 = vector.load %arg5[%c1_186, %c0_187, %c0_188] : memref<2x8x128xf32, #tpu.memory_space<vmem>>, vector<1x8x128xf32>
    %424 = vector.shape_cast %423 : vector<1x8x128xf32> to vector<8x128xf32>
    %425 = vector.shape_cast %405 : vector<8x128xf32> to vector<1x8x128xf32>
    tpu.vector_store %arg5[%c1_186, %c0_187, %c0_188], %425 {strides = array<i32>} : memref<2x8x128xf32, #tpu.memory_space<vmem>>, vector<1x8x128xf32>,
    %c0_189 = arith.constant 0 : index
    %c0_190 = arith.constant 0 : index
    %c0_191 = arith.constant 0 : index
    %426 = vector.load %arg6[%c0_189, %c0_190, %c0_191] : memref<2x8x32xf32, #tpu.memory_space<vmem>>, vector<1x8x32xf32>
    %427 = vector.shape_cast %426 : vector<1x8x32xf32> to vector<8x32xf32>
    %428 = vector.shape_cast %414 : vector<8x32xf32> to vector<1x8x32xf32>
    tpu.vector_store %arg6[%c0_189, %c0_190, %c0_191], %428 {strides = array<i32>} : memref<2x8x32xf32, #tpu.memory_space<vmem>>, vector<1x8x32xf32>,
    %c1_192 = arith.constant 1 : index
    %c0_193 = arith.constant 0 : index
    %c0_194 = arith.constant 0 : index
    %429 = vector.load %arg6[%c1_192, %c0_193, %c0_194] : memref<2x8x32xf32, #tpu.memory_space<vmem>>, vector<1x8x32xf32>
    %430 = vector.shape_cast %429 : vector<1x8x32xf32> to vector<8x32xf32>
    %431 = vector.shape_cast %416 : vector<8x32xf32> to vector<1x8x32xf32>
    tpu.vector_store %arg6[%c1_192, %c0_193, %c0_194], %431 {strides = array<i32>} : memref<2x8x32xf32, #tpu.memory_space<vmem>>, vector<1x8x32xf32>,
    return
  }
}

</mosaic_0001>

<llo_original>
// kernel: forward.1
$region0: #{forward.1}
  #allocation0 [shape = 'u32[]', space=smem, size = 0x4, offset = 0x4, fixed_abs, tag = 'smem constant byte address 0x4 - core index']
  #allocation1 [shape = 'u32[72,128]{1,0:T(1,128)}', space=vmem, size = 0x9000, scoped, tag = 'internal scratch']
  #allocation2 [shape = 'f32[128,128]{1,0:T(8,128)}', space=vmem, size = 0x10000, scoped, tag = 'scratch operand']
  %s0 = inlined_call_operand.hbm [shape: f32[128,48], index: 0, kind: input, shape index: {}]
  %s1 = inlined_call_operand.vmem [shape: f32[48,128], index: 1, kind: input, shape index: {}]
  %s2 = inlined_call_operand.hbm [shape: f32[2,8,128], index: 2, kind: input, shape index: {}, may-alias: {2,5}]
  %s3 = inlined_call_operand.hbm [shape: f32[2,8,32], index: 3, kind: input, shape index: {}, may-alias: {3,6}]
  %s4 = inlined_call_operand.hbm [shape: f32[16,8,32], index: 4, kind: output, shape index: {0}]
  %s5 = inlined_call_operand.hbm [shape: f32[2,8,128], index: 5, kind: output, shape index: {1}, may-alias: {2,5}]
  %s6 = inlined_call_operand.hbm [shape: f32[2,8,32], index: 6, kind: output, shape index: {2}, may-alias: {3,6}]
  %7 = xla_tuple %s4, %s5, %s6
  %s8 = sld [smem:[#allocation0]]
  $region54: #{forward.1} parent=0
    _
  %s10 = ssub.s32 1, %s8
  %s11 = scalar_select 0, %s10, %s8
  $region1: #{forward.1} parent=0
    #allocation3 [shape = 'u8[65536]{0}', space=vmem, size = 0x10000, scoped, tag = 'input window, operand 0, single buffered']
    #allocation4 [shape = 's32[1]{0}', space=sflag, size = 0x4, scoped, tag = 'scoped memory for forward.1']
    #allocation5 [shape = 's32[1]{0}', space=sflag, size = 0x4, scoped, tag = 'scoped memory for forward.1']
    #allocation6 [shape = 'u8[8192]{0}', space=vmem, size = 0x2000, scoped, tag = 'input window, operand 2, single buffered']
    #allocation7 [shape = 's32[1]{0}', space=sflag, size = 0x4, scoped, tag = 'scoped memory for forward.1']
    #allocation8 [shape = 'u8[8192]{0}', space=vmem, size = 0x2000, scoped, tag = 'input window, operand 3, single buffered']
    #allocation9 [shape = 'u8[65536]{0}', space=vmem, size = 0x10000, scoped, tag = 'output window, operand 0, single buffered']
    #allocation10 [shape = 'u8[8192]{0}', space=vmem, size = 0x2000, scoped, tag = 'output window, operand 1, single buffered']
    #allocation11 [shape = 's32[1]{0}', space=sflag, size = 0x4, scoped, tag = 'scoped memory for forward.1']
    #allocation12 [shape = 'u8[8192]{0}', space=vmem, size = 0x2000, scoped, tag = 'output window, operand 2, single buffered']
    %12 = vsyncpa [#allocation4], 0
    %13 = vsyncpa [#allocation7], 0
    %14 = vsyncpa [#allocation5], 0
    %15 = vsyncpa [#allocation11], 0
    // Predicated region
    $region2: #{forward.1} parent=1 // pred_check
      _
    $region3: #{forward.1} parent=1 // pred_check_branch
      %17 = sbr.rel (0) target = $region5
    $region4: #{forward.1} parent=1 // pred_region
      %19 = vsyncadd [#allocation4], 0
      %s20 = sshll.u32 %s0, 4
      %s21 = int_to_ptr.hbm [resolvable:$true] %s20
      %s22 = sshll.u32 [#allocation3], 4
      %s23 = int_to_ptr.vmem [resolvable:$true] %s22
      %28 = dma.hbm_to_vmem [thread:$0]  %s21, 2048, %s23, [#allocation4], 128, 128, 8
    $region5: #{forward.1} parent=1 // pred_fallthru
      _
    // Predicated region
    $region6: #{forward.1} parent=1 // pred_check
      _
    $region7: #{forward.1} parent=1 // pred_check_branch
      %30 = sbr.rel (0) target = $region9
    $region8: #{forward.1} parent=1 // pred_region
      _
    $region9: #{forward.1} parent=1 // pred_fallthru
      _
    // Predicated region
    $region10: #{forward.1} parent=1 // pred_check
      _
    $region11: #{forward.1} parent=1 // pred_check_branch
      %32 = sbr.rel (0) target = $region13
    $region12: #{forward.1} parent=1 // pred_region
      %34 = vsyncadd [#allocation7], 0
      %s35 = sshll.u32 %s2, 4
      %s36 = int_to_ptr.hbm [resolvable:$true] %s35
      %s37 = sshll.u32 [#allocation6], 4
      %s38 = int_to_ptr.vmem [resolvable:$true] %s37
      %43 = dma.hbm_to_vmem [thread:$0]  %s36, 256, %s38, [#allocation7], 128, 128, 8
    $region13: #{forward.1} parent=1 // pred_fallthru
      _
    // Predicated region
    $region14: #{forward.1} parent=1 // pred_check
      _
    $region15: #{forward.1} parent=1 // pred_check_branch
      %45 = sbr.rel (0) target = $region17
    $region16: #{forward.1} parent=1 // pred_region
      %47 = vsyncadd [#allocation7], 0
      %s48 = sshll.u32 %s3, 4
      %s49 = int_to_ptr.hbm [resolvable:$true] %s48
      %s50 = sshll.u32 [#allocation8], 4
      %s51 = int_to_ptr.vmem [resolvable:$true] %s50
      %56 = dma.hbm_to_vmem [thread:$0]  %s49, 256, %s51, [#allocation7], 128, 128, 8
    $region17: #{forward.1} parent=1 // pred_fallthru
      _
    // Predicated region
    $region18: #{forward.1} parent=1 // pred_check
      _
    $region19: #{forward.1} parent=1 // pred_check_branch
      %58 = sbr.rel (0) target = $region21
    $region20: #{forward.1} parent=1 // pred_region
      %60 = dma.done [#allocation4], 2048
    $region21: #{forward.1} parent=1 // pred_fallthru
      _
    // Predicated region
    $region22: #{forward.1} parent=1 // pred_check
      _
    $region23: #{forward.1} parent=1 // pred_check_branch
      %62 = sbr.rel (0) target = $region25
    $region24: #{forward.1} parent=1 // pred_region
      %64 = dma.done [#allocation7], 256
    $region25: #{forward.1} parent=1 // pred_fallthru
      _
    // Predicated region
    $region26: #{forward.1} parent=1 // pred_check
      _
    $region27: #{forward.1} parent=1 // pred_check_branch
      %66 = sbr.rel (0) target = $region29
    $region28: #{forward.1} parent=1 // pred_region
      %68 = dma.done [#allocation7], 256
    $region29: #{forward.1} parent=1 // pred_fallthru
      _
    %v69 = vld [vmem:[#allocation3] sm:$0xff]
    %v70 = vld [vmem:[#allocation3 + $0x8] sm:$0xff]
    %v71 = vld [vmem:[#allocation3 + $0x10] sm:$0xff]
    %v72 = vld [vmem:[#allocation3 + $0x18] sm:$0xff]
    %v73 = vld [vmem:[#allocation3 + $0x20] sm:$0xff]
    %v74 = vld [vmem:[#allocation3 + $0x28] sm:$0xff]
    %v75 = vld [vmem:[#allocation3 + $0x30] sm:$0xff]
    %v76 = vld [vmem:[#allocation3 + $0x38] sm:$0xff]
    %v77 = vld [vmem:[#allocation3 + $0x40] sm:$0xff]
    %v78 = vld [vmem:[#allocation3 + $0x48] sm:$0xff]
    %v79 = vld [vmem:[#allocation3 + $0x50] sm:$0xff]
    %v80 = vld [vmem:[#allocation3 + $0x58] sm:$0xff]
    %v81 = vld [vmem:[#allocation3 + $0x60] sm:$0xff]
    %v82 = vld [vmem:[#allocation3 + $0x68] sm:$0xff]
    %v83 = vld [vmem:[#allocation3 + $0x70] sm:$0xff]
    %v84 = vld [vmem:[#allocation3 + $0x78] sm:$0xff]
    %v85 = vld [vmem:[%s1] sm:$0xff]
    %v86 = vld [vmem:[%s1 + $0x8] sm:$0xff]
    %v87 = vld [vmem:[%s1 + $0x10] sm:$0xff]
    %v88 = vld [vmem:[%s1 + $0x18] sm:$0xff]
    %v89 = vld [vmem:[%s1 + $0x20] sm:$0xff]
    %v90 = vld [vmem:[%s1 + $0x28] sm:$0xff]
    %vm91 = vcmask 392192
    %v93 = vsel %vm91, %v69, 0
    %v96 = vsel %vm91, %v70, 0
    %v99 = vsel %vm91, %v71, 0
    %v102 = vsel %vm91, %v72, 0
    %v105 = vsel %vm91, %v73, 0
    %v108 = vsel %vm91, %v74, 0
    %v111 = vsel %vm91, %v75, 0
    %v114 = vsel %vm91, %v76, 0
    %v117 = vsel %vm91, %v77, 0
    %v120 = vsel %vm91, %v78, 0
    %v123 = vsel %vm91, %v79, 0
    %v126 = vsel %vm91, %v80, 0
    %v129 = vsel %vm91, %v81, 0
    %v132 = vsel %vm91, %v82, 0
    %v135 = vsel %vm91, %v83, 0
    %v138 = vsel %vm91, %v84, 0
    %140 = vmatpush.msra.mxu0 0.0
    %141 = vmatpush.msra.mxu0 0.0
    %142 = vmatpush.msra.mxu0 0.0
    %143 = vmatpush.msra.mxu0 0.0
    %144 = vmatpush.msra.mxu0 0.0
    %145 = vmatpush.msra.mxu0 0.0
    %146 = vmatpush.msra.mxu0 0.0
    %147 = vmatpush.msra.mxu0 0.0
    %148 = vmatpush.msra.mxu0 0.0
    %149 = vmatpush.msra.mxu0 0.0
    %v150 = vand.u32 %v90, 4294901760
    %151 = vmatpush.msra.mxu0 %v150
    %v152 = vand.u32 %v89, 4294901760
    %153 = vmatpush.msra.mxu0 %v152
    %v154 = vand.u32 %v88, 4294901760
    %155 = vmatpush.msra.mxu0 %v154
    %v156 = vand.u32 %v87, 4294901760
    %157 = vmatpush.msra.mxu0 %v156
    %v158 = vand.u32 %v86, 4294901760
    %159 = vmatpush.msra.mxu0 %v158
    %v160 = vand.u32 %v85, 4294901760
    %161 = vmatpush.msra.mxu0 %v160
    %v162 = vand.u32 %v93, 4294901760
    %v163 = vsub.f32 %v93, %v162
    %v164 = vand.u32 %v163, 4294901760
    %v165 = vsub.f32 %v163, %v164
    %v166 = vand.u32 %v165, 4294901760
    %167 = vmatmul.f32.gmra.mxu0 %v166
    %v168 = vpop.f32.mrf.mxu0
    %v169 = vadd.f32 0.0, %v168
    %v170 = vand.u32 %v96, 4294901760
    %v171 = vsub.f32 %v96, %v170
    %v172 = vand.u32 %v171, 4294901760
    %v173 = vsub.f32 %v171, %v172
    %v174 = vand.u32 %v173, 4294901760
    %175 = vmatmul.f32.gmra.mxu0 %v174
    %v176 = vpop.f32.mrf.mxu0
    %v177 = vadd.f32 0.0, %v176
    %v178 = vand.u32 %v99, 4294901760
    %v179 = vsub.f32 %v99, %v178
    %v180 = vand.u32 %v179, 4294901760
    %v181 = vsub.f32 %v179, %v180
    %v182 = vand.u32 %v181, 4294901760
    %183 = vmatmul.f32.gmra.mxu0 %v182
    %v184 = vpop.f32.mrf.mxu0
    %v185 = vadd.f32 0.0, %v184
    %v186 = vand.u32 %v102, 4294901760
    %v187 = vsub.f32 %v102, %v186
    %v188 = vand.u32 %v187, 4294901760
    %v189 = vsub.f32 %v187, %v188
    %v190 = vand.u32 %v189, 4294901760
    %191 = vmatmul.f32.gmra.mxu0 %v190
    %v192 = vpop.f32.mrf.mxu0
    %v193 = vadd.f32 0.0, %v192
    %v194 = vand.u32 %v105, 4294901760
    %v195 = vsub.f32 %v105, %v194
    %v196 = vand.u32 %v195, 4294901760
    %v197 = vsub.f32 %v195, %v196
    %v198 = vand.u32 %v197, 4294901760
    %199 = vmatmul.f32.gmra.mxu0 %v198
    %v200 = vpop.f32.mrf.mxu0
    %v201 = vadd.f32 0.0, %v200
    %v202 = vand.u32 %v108, 4294901760
    %v203 = vsub.f32 %v108, %v202
    %v204 = vand.u32 %v203, 4294901760
    %v205 = vsub.f32 %v203, %v204
    %v206 = vand.u32 %v205, 4294901760
    %207 = vmatmul.f32.gmra.mxu0 %v206
    %v208 = vpop.f32.mrf.mxu0
    %v209 = vadd.f32 0.0, %v208
    %v210 = vand.u32 %v111, 4294901760
    %v211 = vsub.f32 %v111, %v210
    %v212 = vand.u32 %v211, 4294901760
    %v213 = vsub.f32 %v211, %v212
    %v214 = vand.u32 %v213, 4294901760
    %215 = vmatmul.f32.gmra.mxu0 %v214
    %v216 = vpop.f32.mrf.mxu0
    %v217 = vadd.f32 0.0, %v216
    %v218 = vand.u32 %v114, 4294901760
    %v219 = vsub.f32 %v114, %v218
    %v220 = vand.u32 %v219, 4294901760
    %v221 = vsub.f32 %v219, %v220
    %v222 = vand.u32 %v221, 4294901760
    %223 = vmatmul.f32.gmra.mxu0 %v222
    %v224 = vpop.f32.mrf.mxu0
    %v225 = vadd.f32 0.0, %v224
    %v226 = vand.u32 %v117, 4294901760
    %v227 = vsub.f32 %v117, %v226
    %v228 = vand.u32 %v227, 4294901760
    %v229 = vsub.f32 %v227, %v228
    %v230 = vand.u32 %v229, 4294901760
    %231 = vmatmul.f32.gmra.mxu0 %v230
    %v232 = vpop.f32.mrf.mxu0
    %v233 = vadd.f32 0.0, %v232
    %v234 = vand.u32 %v120, 4294901760
    %v235 = vsub.f32 %v120, %v234
    %v236 = vand.u32 %v235, 4294901760
    %v237 = vsub.f32 %v235, %v236
    %v238 = vand.u32 %v237, 4294901760
    %239 = vmatmul.f32.gmra.mxu0 %v238
    %v240 = vpop.f32.mrf.mxu0
    %v241 = vadd.f32 0.0, %v240
    %v242 = vand.u32 %v123, 4294901760
    %v243 = vsub.f32 %v123, %v242
    %v244 = vand.u32 %v243, 4294901760
    %v245 = vsub.f32 %v243, %v244
    %v246 = vand.u32 %v245, 4294901760
    %247 = vmatmul.f32.gmra.mxu0 %v246
    %v248 = vpop.f32.mrf.mxu0
    %v249 = vadd.f32 0.0, %v248
    %v250 = vand.u32 %v126, 4294901760
    %v251 = vsub.f32 %v126, %v250
    %v252 = vand.u32 %v251, 4294901760
    %v253 = vsub.f32 %v251, %v252
    %v254 = vand.u32 %v253, 4294901760
    %255 = vmatmul.f32.gmra.mxu0 %v254
    %v256 = vpop.f32.mrf.mxu0
    %v257 = vadd.f32 0.0, %v256
    %v258 = vand.u32 %v129, 4294901760
    %v259 = vsub.f32 %v129, %v258
    %v260 = vand.u32 %v259, 4294901760
    %v261 = vsub.f32 %v259, %v260
    %v262 = vand.u32 %v261, 4294901760
    %263 = vmatmul.f32.gmra.mxu0 %v262
    %v264 = vpop.f32.mrf.mxu0
    %v265 = vadd.f32 0.0, %v264
    %v266 = vand.u32 %v132, 4294901760
    %v267 = vsub.f32 %v132, %v266
    %v268 = vand.u32 %v267, 4294901760
    %v269 = vsub.f32 %v267, %v268
    %v270 = vand.u32 %v269, 4294901760
    %271 = vmatmul.f32.gmra.mxu0 %v270
    %v272 = vpop.f32.mrf.mxu0
    %v273 = vadd.f32 0.0, %v272
    %v274 = vand.u32 %v135, 4294901760
    %v275 = vsub.f32 %v135, %v274
    %v276 = vand.u32 %v275, 4294901760
    %v277 = vsub.f32 %v275, %v276
    %v278 = vand.u32 %v277, 4294901760
    %279 = vmatmul.f32.gmra.mxu0 %v278
    %v280 = vpop.f32.mrf.mxu0
    %v281 = vadd.f32 0.0, %v280
    %v282 = vand.u32 %v138, 4294901760
    %v283 = vsub.f32 %v138, %v282
    %v284 = vand.u32 %v283, 4294901760
    %v285 = vsub.f32 %v283, %v284
    %v286 = vand.u32 %v285, 4294901760
    %287 = vmatmul.f32.gmra.mxu0 %v286
    %v288 = vpop.f32.mrf.mxu0
    %v289 = vadd.f32 0.0, %v288
    %290 = vdwg.mxu0
    %291 = vmatpush.msra.mxu0 0.0
    %292 = vmatpush.msra.mxu0 0.0
    %293 = vmatpush.msra.mxu0 0.0
    %294 = vmatpush.msra.mxu0 0.0
    %295 = vmatpush.msra.mxu0 0.0
    %296 = vmatpush.msra.mxu0 0.0
    %297 = vmatpush.msra.mxu0 0.0
    %298 = vmatpush.msra.mxu0 0.0
    %299 = vmatpush.msra.mxu0 0.0
    %300 = vmatpush.msra.mxu0 0.0
    %v301 = vand.u32 %v90, 4294901760
    %v302 = vsub.f32 %v90, %v301
    %v303 = vand.u32 %v302, 4294901760
    %v304 = vsub.f32 %v302, %v303
    %v305 = vand.u32 %v304, 4294901760
    %306 = vmatpush.msra.mxu0 %v305
    %v307 = vand.u32 %v89, 4294901760
    %v308 = vsub.f32 %v89, %v307
    %v309 = vand.u32 %v308, 4294901760
    %v310 = vsub.f32 %v308, %v309
    %v311 = vand.u32 %v310, 4294901760
    %312 = vmatpush.msra.mxu0 %v311
    %v313 = vand.u32 %v88, 4294901760
    %v314 = vsub.f32 %v88, %v313
    %v315 = vand.u32 %v314, 4294901760
    %v316 = vsub.f32 %v314, %v315
    %v317 = vand.u32 %v316, 4294901760
    %318 = vmatpush.msra.mxu0 %v317
    %v319 = vand.u32 %v87, 4294901760
    %v320 = vsub.f32 %v87, %v319
    %v321 = vand.u32 %v320, 4294901760
    %v322 = vsub.f32 %v320, %v321
    %v323 = vand.u32 %v322, 4294901760
    %324 = vmatpush.msra.mxu0 %v323
    %v325 = vand.u32 %v86, 4294901760
    %v326 = vsub.f32 %v86, %v325
    %v327 = vand.u32 %v326, 4294901760
    %v328 = vsub.f32 %v326, %v327
    %v329 = vand.u32 %v328, 4294901760
    %330 = vmatpush.msra.mxu0 %v329
    %v331 = vand.u32 %v85, 4294901760
    %v332 = vsub.f32 %v85, %v331
    %v333 = vand.u32 %v332, 4294901760
    %v334 = vsub.f32 %v332, %v333
    %v335 = vand.u32 %v334, 4294901760
    %336 = vmatpush.msra.mxu0 %v335
    %v337 = vand.u32 %v93, 4294901760
    %338 = vmatmul.f32.gmra.mxu0 %v337
    %v339 = vpop.f32.mrf.mxu0
    %v340 = vadd.f32 %v169, %v339
    %v341 = vand.u32 %v96, 4294901760
    %342 = vmatmul.f32.gmra.mxu0 %v341
    %v343 = vpop.f32.mrf.mxu0
    %v344 = vadd.f32 %v177, %v343
    %v345 = vand.u32 %v99, 4294901760
    %346 = vmatmul.f32.gmra.mxu0 %v345
    %v347 = vpop.f32.mrf.mxu0
    %v348 = vadd.f32 %v185, %v347
    %v349 = vand.u32 %v102, 4294901760
    %350 = vmatmul.f32.gmra.mxu0 %v349
    %v351 = vpop.f32.mrf.mxu0
    %v352 = vadd.f32 %v193, %v351
    %v353 = vand.u32 %v105, 4294901760
    %354 = vmatmul.f32.gmra.mxu0 %v353
    %v355 = vpop.f32.mrf.mxu0
    %v356 = vadd.f32 %v201, %v355
    %v357 = vand.u32 %v108, 4294901760
    %358 = vmatmul.f32.gmra.mxu0 %v357
    %v359 = vpop.f32.mrf.mxu0
    %v360 = vadd.f32 %v209, %v359
    %v361 = vand.u32 %v111, 4294901760
    %362 = vmatmul.f32.gmra.mxu0 %v361
    %v363 = vpop.f32.mrf.mxu0
    %v364 = vadd.f32 %v217, %v363
    %v365 = vand.u32 %v114, 4294901760
    %366 = vmatmul.f32.gmra.mxu0 %v365
    %v367 = vpop.f32.mrf.mxu0
    %v368 = vadd.f32 %v225, %v367
    %v369 = vand.u32 %v117, 4294901760
    %370 = vmatmul.f32.gmra.mxu0 %v369
    %v371 = vpop.f32.mrf.mxu0
    %v372 = vadd.f32 %v233, %v371
    %v373 = vand.u32 %v120, 4294901760
    %374 = vmatmul.f32.gmra.mxu0 %v373
    %v375 = vpop.f32.mrf.mxu0
    %v376 = vadd.f32 %v241, %v375
    %v377 = vand.u32 %v123, 4294901760
    %378 = vmatmul.f32.gmra.mxu0 %v377
    %v379 = vpop.f32.mrf.mxu0
    %v380 = vadd.f32 %v249, %v379
    %v381 = vand.u32 %v126, 4294901760
    %382 = vmatmul.f32.gmra.mxu0 %v381
    %v383 = vpop.f32.mrf.mxu0
    %v384 = vadd.f32 %v257, %v383
    %v385 = vand.u32 %v129, 4294901760
    %386 = vmatmul.f32.gmra.mxu0 %v385
    %v387 = vpop.f32.mrf.mxu0
    %v388 = vadd.f32 %v265, %v387
    %v389 = vand.u32 %v132, 4294901760
    %390 = vmatmul.f32.gmra.mxu0 %v389
    %v391 = vpop.f32.mrf.mxu0
    %v392 = vadd.f32 %v273, %v391
    %v393 = vand.u32 %v135, 4294901760
    %394 = vmatmul.f32.gmra.mxu0 %v393
    %v395 = vpop.f32.mrf.mxu0
    %v396 = vadd.f32 %v281, %v395
    %v397 = vand.u32 %v138, 4294901760
    %398 = vmatmul.f32.gmra.mxu0 %v397
    %v399 = vpop.f32.mrf.mxu0
    %v400 = vadd.f32 %v289, %v399
    %401 = vdwg.mxu0
    %402 = vmatpush.msra.mxu0 0.0
    %403 = vmatpush.msra.mxu0 0.0
    %404 = vmatpush.msra.mxu0 0.0
    %405 = vmatpush.msra.mxu0 0.0
    %406 = vmatpush.msra.mxu0 0.0
    %407 = vmatpush.msra.mxu0 0.0
    %408 = vmatpush.msra.mxu0 0.0
    %409 = vmatpush.msra.mxu0 0.0
    %410 = vmatpush.msra.mxu0 0.0
    %411 = vmatpush.msra.mxu0 0.0
    %v412 = vand.u32 %v90, 4294901760
    %v413 = vsub.f32 %v90, %v412
    %414 = vmatpush.msra.mxu0 %v413
    %v415 = vand.u32 %v89, 4294901760
    %v416 = vsub.f32 %v89, %v415
    %417 = vmatpush.msra.mxu0 %v416
    %v418 = vand.u32 %v88, 4294901760
    %v419 = vsub.f32 %v88, %v418
    %420 = vmatpush.msra.mxu0 %v419
    %v421 = vand.u32 %v87, 4294901760
    %v422 = vsub.f32 %v87, %v421
    %423 = vmatpush.msra.mxu0 %v422
    %v424 = vand.u32 %v86, 4294901760
    %v425 = vsub.f32 %v86, %v424
    %426 = vmatpush.msra.mxu0 %v425
    %v427 = vand.u32 %v85, 4294901760
    %v428 = vsub.f32 %v85, %v427
    %429 = vmatpush.msra.mxu0 %v428
    %v430 = vand.u32 %v93, 4294901760
    %v431 = vsub.f32 %v93, %v430
    %432 = vmatmul.f32.gmra.mxu0 %v431
    %v433 = vpop.f32.mrf.mxu0
    %v434 = vadd.f32 %v340, %v433
    %v435 = vand.u32 %v96, 4294901760
    %v436 = vsub.f32 %v96, %v435
    %437 = vmatmul.f32.gmra.mxu0 %v436
    %v438 = vpop.f32.mrf.mxu0
    %v439 = vadd.f32 %v344, %v438
    %v440 = vand.u32 %v99, 4294901760
    %v441 = vsub.f32 %v99, %v440
    %442 = vmatmul.f32.gmra.mxu0 %v441
    %v443 = vpop.f32.mrf.mxu0
    %v444 = vadd.f32 %v348, %v443
    %v445 = vand.u32 %v102, 4294901760
    %v446 = vsub.f32 %v102, %v445
    %447 = vmatmul.f32.gmra.mxu0 %v446
    %v448 = vpop.f32.mrf.mxu0
    %v449 = vadd.f32 %v352, %v448
    %v450 = vand.u32 %v105, 4294901760
    %v451 = vsub.f32 %v105, %v450
    %452 = vmatmul.f32.gmra.mxu0 %v451
    %v453 = vpop.f32.mrf.mxu0
    %v454 = vadd.f32 %v356, %v453
    %v455 = vand.u32 %v108, 4294901760
    %v456 = vsub.f32 %v108, %v455
    %457 = vmatmul.f32.gmra.mxu0 %v456
    %v458 = vpop.f32.mrf.mxu0
    %v459 = vadd.f32 %v360, %v458
    %v460 = vand.u32 %v111, 4294901760
    %v461 = vsub.f32 %v111, %v460
    %462 = vmatmul.f32.gmra.mxu0 %v461
    %v463 = vpop.f32.mrf.mxu0
    %v464 = vadd.f32 %v364, %v463
    %v465 = vand.u32 %v114, 4294901760
    %v466 = vsub.f32 %v114, %v465
    %467 = vmatmul.f32.gmra.mxu0 %v466
    %v468 = vpop.f32.mrf.mxu0
    %v469 = vadd.f32 %v368, %v468
    %v470 = vand.u32 %v117, 4294901760
    %v471 = vsub.f32 %v117, %v470
    %472 = vmatmul.f32.gmra.mxu0 %v471
    %v473 = vpop.f32.mrf.mxu0
    %v474 = vadd.f32 %v372, %v473
    %v475 = vand.u32 %v120, 4294901760
    %v476 = vsub.f32 %v120, %v475
    %477 = vmatmul.f32.gmra.mxu0 %v476
    %v478 = vpop.f32.mrf.mxu0
    %v479 = vadd.f32 %v376, %v478
    %v480 = vand.u32 %v123, 4294901760
    %v481 = vsub.f32 %v123, %v480
    %482 = vmatmul.f32.gmra.mxu0 %v481
    %v483 = vpop.f32.mrf.mxu0
    %v484 = vadd.f32 %v380, %v483
    %v485 = vand.u32 %v126, 4294901760
    %v486 = vsub.f32 %v126, %v485
    %487 = vmatmul.f32.gmra.mxu0 %v486
    %v488 = vpop.f32.mrf.mxu0
    %v489 = vadd.f32 %v384, %v488
    %v490 = vand.u32 %v129, 4294901760
    %v491 = vsub.f32 %v129, %v490
    %492 = vmatmul.f32.gmra.mxu0 %v491
    %v493 = vpop.f32.mrf.mxu0
    %v494 = vadd.f32 %v388, %v493
    %v495 = vand.u32 %v132, 4294901760
    %v496 = vsub.f32 %v132, %v495
    %497 = vmatmul.f32.gmra.mxu0 %v496
    %v498 = vpop.f32.mrf.mxu0
    %v499 = vadd.f32 %v392, %v498
    %v500 = vand.u32 %v135, 4294901760
    %v501 = vsub.f32 %v135, %v500
    %502 = vmatmul.f32.gmra.mxu0 %v501
    %v503 = vpop.f32.mrf.mxu0
    %v504 = vadd.f32 %v396, %v503
    %v505 = vand.u32 %v138, 4294901760
    %v506 = vsub.f32 %v138, %v505
    %507 = vmatmul.f32.gmra.mxu0 %v506
    %v508 = vpop.f32.mrf.mxu0
    %v509 = vadd.f32 %v400, %v508
    %510 = vdwg.mxu0
    %511 = vmatpush.msra.mxu0 0.0
    %512 = vmatpush.msra.mxu0 0.0
    %513 = vmatpush.msra.mxu0 0.0
    %514 = vmatpush.msra.mxu0 0.0
    %515 = vmatpush.msra.mxu0 0.0
    %516 = vmatpush.msra.mxu0 0.0
    %517 = vmatpush.msra.mxu0 0.0
    %518 = vmatpush.msra.mxu0 0.0
    %519 = vmatpush.msra.mxu0 0.0
    %520 = vmatpush.msra.mxu0 0.0
    %v521 = vand.u32 %v90, 4294901760
    %522 = vmatpush.msra.mxu0 %v521
    %v523 = vand.u32 %v89, 4294901760
    %524 = vmatpush.msra.mxu0 %v523
    %v525 = vand.u32 %v88, 4294901760
    %526 = vmatpush.msra.mxu0 %v525
    %v527 = vand.u32 %v87, 4294901760
    %528 = vmatpush.msra.mxu0 %v527
    %v529 = vand.u32 %v86, 4294901760
    %530 = vmatpush.msra.mxu0 %v529
    %v531 = vand.u32 %v85, 4294901760
    %532 = vmatpush.msra.mxu0 %v531
    %v533 = vand.u32 %v93, 4294901760
    %v534 = vsub.f32 %v93, %v533
    %v535 = vand.u32 %v534, 4294901760
    %536 = vmatmul.f32.gmra.mxu0 %v535
    %v537 = vpop.f32.mrf.mxu0
    %v538 = vadd.f32 %v434, %v537
    %v539 = vand.u32 %v96, 4294901760
    %v540 = vsub.f32 %v96, %v539
    %v541 = vand.u32 %v540, 4294901760
    %542 = vmatmul.f32.gmra.mxu0 %v541
    %v543 = vpop.f32.mrf.mxu0
    %v544 = vadd.f32 %v439, %v543
    %v545 = vand.u32 %v99, 4294901760
    %v546 = vsub.f32 %v99, %v545
    %v547 = vand.u32 %v546, 4294901760
    %548 = vmatmul.f32.gmra.mxu0 %v547
    %v549 = vpop.f32.mrf.mxu0
    %v550 = vadd.f32 %v444, %v549
    %v551 = vand.u32 %v102, 4294901760
    %v552 = vsub.f32 %v102, %v551
    %v553 = vand.u32 %v552, 4294901760
    %554 = vmatmul.f32.gmra.mxu0 %v553
    %v555 = vpop.f32.mrf.mxu0
    %v556 = vadd.f32 %v449, %v555
    %v557 = vand.u32 %v105, 4294901760
    %v558 = vsub.f32 %v105, %v557
    %v559 = vand.u32 %v558, 4294901760
    %560 = vmatmul.f32.gmra.mxu0 %v559
    %v561 = vpop.f32.mrf.mxu0
    %v562 = vadd.f32 %v454, %v561
    %v563 = vand.u32 %v108, 4294901760
    %v564 = vsub.f32 %v108, %v563
    %v565 = vand.u32 %v564, 4294901760
    %566 = vmatmul.f32.gmra.mxu0 %v565
    %v567 = vpop.f32.mrf.mxu0
    %v568 = vadd.f32 %v459, %v567
    %v569 = vand.u32 %v111, 4294901760
    %v570 = vsub.f32 %v111, %v569
    %v571 = vand.u32 %v570, 4294901760
    %572 = vmatmul.f32.gmra.mxu0 %v571
    %v573 = vpop.f32.mrf.mxu0
    %v574 = vadd.f32 %v464, %v573
    %v575 = vand.u32 %v114, 4294901760
    %v576 = vsub.f32 %v114, %v575
    %v577 = vand.u32 %v576, 4294901760
    %578 = vmatmul.f32.gmra.mxu0 %v577
    %v579 = vpop.f32.mrf.mxu0
    %v580 = vadd.f32 %v469, %v579
    %v581 = vand.u32 %v117, 4294901760
    %v582 = vsub.f32 %v117, %v581
    %v583 = vand.u32 %v582, 4294901760
    %584 = vmatmul.f32.gmra.mxu0 %v583
    %v585 = vpop.f32.mrf.mxu0
    %v586 = vadd.f32 %v474, %v585
    %v587 = vand.u32 %v120, 4294901760
    %v588 = vsub.f32 %v120, %v587
    %v589 = vand.u32 %v588, 4294901760
    %590 = vmatmul.f32.gmra.mxu0 %v589
    %v591 = vpop.f32.mrf.mxu0
    %v592 = vadd.f32 %v479, %v591
    %v593 = vand.u32 %v123, 4294901760
    %v594 = vsub.f32 %v123, %v593
    %v595 = vand.u32 %v594, 4294901760
    %596 = vmatmul.f32.gmra.mxu0 %v595
    %v597 = vpop.f32.mrf.mxu0
    %v598 = vadd.f32 %v484, %v597
    %v599 = vand.u32 %v126, 4294901760
    %v600 = vsub.f32 %v126, %v599
    %v601 = vand.u32 %v600, 4294901760
    %602 = vmatmul.f32.gmra.mxu0 %v601
    %v603 = vpop.f32.mrf.mxu0
    %v604 = vadd.f32 %v489, %v603
    %v605 = vand.u32 %v129, 4294901760
    %v606 = vsub.f32 %v129, %v605
    %v607 = vand.u32 %v606, 4294901760
    %608 = vmatmul.f32.gmra.mxu0 %v607
    %v609 = vpop.f32.mrf.mxu0
    %v610 = vadd.f32 %v494, %v609
    %v611 = vand.u32 %v132, 4294901760
    %v612 = vsub.f32 %v132, %v611
    %v613 = vand.u32 %v612, 4294901760
    %614 = vmatmul.f32.gmra.mxu0 %v613
    %v615 = vpop.f32.mrf.mxu0
    %v616 = vadd.f32 %v499, %v615
    %v617 = vand.u32 %v135, 4294901760
    %v618 = vsub.f32 %v135, %v617
    %v619 = vand.u32 %v618, 4294901760
    %620 = vmatmul.f32.gmra.mxu0 %v619
    %v621 = vpop.f32.mrf.mxu0
    %v622 = vadd.f32 %v504, %v621
    %v623 = vand.u32 %v138, 4294901760
    %v624 = vsub.f32 %v138, %v623
    %v625 = vand.u32 %v624, 4294901760
    %626 = vmatmul.f32.gmra.mxu0 %v625
    %v627 = vpop.f32.mrf.mxu0
    %v628 = vadd.f32 %v509, %v627
    %629 = vdwg.mxu0
    %630 = vmatpush.msra.mxu0 0.0
    %631 = vmatpush.msra.mxu0 0.0
    %632 = vmatpush.msra.mxu0 0.0
    %633 = vmatpush.msra.mxu0 0.0
    %634 = vmatpush.msra.mxu0 0.0
    %635 = vmatpush.msra.mxu0 0.0
    %636 = vmatpush.msra.mxu0 0.0
    %637 = vmatpush.msra.mxu0 0.0
    %638 = vmatpush.msra.mxu0 0.0
    %639 = vmatpush.msra.mxu0 0.0
    %v640 = vand.u32 %v90, 4294901760
    %v641 = vsub.f32 %v90, %v640
    %v642 = vand.u32 %v641, 4294901760
    %643 = vmatpush.msra.mxu0 %v642
    %v644 = vand.u32 %v89, 4294901760
    %v645 = vsub.f32 %v89, %v644
    %v646 = vand.u32 %v645, 4294901760
    %647 = vmatpush.msra.mxu0 %v646
    %v648 = vand.u32 %v88, 4294901760
    %v649 = vsub.f32 %v88, %v648
    %v650 = vand.u32 %v649, 4294901760
    %651 = vmatpush.msra.mxu0 %v650
    %v652 = vand.u32 %v87, 4294901760
    %v653 = vsub.f32 %v87, %v652
    %v654 = vand.u32 %v653, 4294901760
    %655 = vmatpush.msra.mxu0 %v654
    %v656 = vand.u32 %v86, 4294901760
    %v657 = vsub.f32 %v86, %v656
    %v658 = vand.u32 %v657, 4294901760
    %659 = vmatpush.msra.mxu0 %v658
    %v660 = vand.u32 %v85, 4294901760
    %v661 = vsub.f32 %v85, %v660
    %v662 = vand.u32 %v661, 4294901760
    %663 = vmatpush.msra.mxu0 %v662
    %v664 = vand.u32 %v93, 4294901760
    %665 = vmatmul.f32.gmra.mxu0 %v664
    %v666 = vpop.f32.mrf.mxu0
    %v667 = vadd.f32 %v538, %v666
    %v668 = vand.u32 %v96, 4294901760
    %669 = vmatmul.f32.gmra.mxu0 %v668
    %v670 = vpop.f32.mrf.mxu0
    %v671 = vadd.f32 %v544, %v670
    %v672 = vand.u32 %v99, 4294901760
    %673 = vmatmul.f32.gmra.mxu0 %v672
    %v674 = vpop.f32.mrf.mxu0
    %v675 = vadd.f32 %v550, %v674
    %v676 = vand.u32 %v102, 4294901760
    %677 = vmatmul.f32.gmra.mxu0 %v676
    %v678 = vpop.f32.mrf.mxu0
    %v679 = vadd.f32 %v556, %v678
    %v680 = vand.u32 %v105, 4294901760
    %681 = vmatmul.f32.gmra.mxu0 %v680
    %v682 = vpop.f32.mrf.mxu0
    %v683 = vadd.f32 %v562, %v682
    %v684 = vand.u32 %v108, 4294901760
    %685 = vmatmul.f32.gmra.mxu0 %v684
    %v686 = vpop.f32.mrf.mxu0
    %v687 = vadd.f32 %v568, %v686
    %v688 = vand.u32 %v111, 4294901760
    %689 = vmatmul.f32.gmra.mxu0 %v688
    %v690 = vpop.f32.mrf.mxu0
    %v691 = vadd.f32 %v574, %v690
    %v692 = vand.u32 %v114, 4294901760
    %693 = vmatmul.f32.gmra.mxu0 %v692
    %v694 = vpop.f32.mrf.mxu0
    %v695 = vadd.f32 %v580, %v694
    %v696 = vand.u32 %v117, 4294901760
    %697 = vmatmul.f32.gmra.mxu0 %v696
    %v698 = vpop.f32.mrf.mxu0
    %v699 = vadd.f32 %v586, %v698
    %v700 = vand.u32 %v120, 4294901760
    %701 = vmatmul.f32.gmra.mxu0 %v700
    %v702 = vpop.f32.mrf.mxu0
    %v703 = vadd.f32 %v592, %v702
    %v704 = vand.u32 %v123, 4294901760
    %705 = vmatmul.f32.gmra.mxu0 %v704
    %v706 = vpop.f32.mrf.mxu0
    %v707 = vadd.f32 %v598, %v706
    %v708 = vand.u32 %v126, 4294901760
    %709 = vmatmul.f32.gmra.mxu0 %v708
    %v710 = vpop.f32.mrf.mxu0
    %v711 = vadd.f32 %v604, %v710
    %v712 = vand.u32 %v129, 4294901760
    %713 = vmatmul.f32.gmra.mxu0 %v712
    %v714 = vpop.f32.mrf.mxu0
    %v715 = vadd.f32 %v610, %v714
    %v716 = vand.u32 %v132, 4294901760
    %717 = vmatmul.f32.gmra.mxu0 %v716
    %v718 = vpop.f32.mrf.mxu0
    %v719 = vadd.f32 %v616, %v718
    %v720 = vand.u32 %v135, 4294901760
    %721 = vmatmul.f32.gmra.mxu0 %v720
    %v722 = vpop.f32.mrf.mxu0
    %v723 = vadd.f32 %v622, %v722
    %v724 = vand.u32 %v138, 4294901760
    %725 = vmatmul.f32.gmra.mxu0 %v724
    %v726 = vpop.f32.mrf.mxu0
    %v727 = vadd.f32 %v628, %v726
    %728 = vdwg.mxu0
    %729 = vmatpush.msra.mxu0 0.0
    %730 = vmatpush.msra.mxu0 0.0
    %731 = vmatpush.msra.mxu0 0.0
    %732 = vmatpush.msra.mxu0 0.0
    %733 = vmatpush.msra.mxu0 0.0
    %734 = vmatpush.msra.mxu0 0.0
    %735 = vmatpush.msra.mxu0 0.0
    %736 = vmatpush.msra.mxu0 0.0
    %737 = vmatpush.msra.mxu0 0.0
    %738 = vmatpush.msra.mxu0 0.0
    %v739 = vand.u32 %v90, 4294901760
    %740 = vmatpush.msra.mxu0 %v739
    %v741 = vand.u32 %v89, 4294901760
    %742 = vmatpush.msra.mxu0 %v741
    %v743 = vand.u32 %v88, 4294901760
    %744 = vmatpush.msra.mxu0 %v743
    %v745 = vand.u32 %v87, 4294901760
    %746 = vmatpush.msra.mxu0 %v745
    %v747 = vand.u32 %v86, 4294901760
    %748 = vmatpush.msra.mxu0 %v747
    %v749 = vand.u32 %v85, 4294901760
    %750 = vmatpush.msra.mxu0 %v749
    %v751 = vand.u32 %v93, 4294901760
    %752 = vmatmul.f32.gmra.mxu0 %v751
    %v753 = vpop.f32.mrf.mxu0
    %v754 = vadd.f32 %v667, %v753
    %v755 = vand.u32 %v96, 4294901760
    %756 = vmatmul.f32.gmra.mxu0 %v755
    %v757 = vpop.f32.mrf.mxu0
    %v758 = vadd.f32 %v671, %v757
    %v759 = vand.u32 %v99, 4294901760
    %760 = vmatmul.f32.gmra.mxu0 %v759
    %v761 = vpop.f32.mrf.mxu0
    %v762 = vadd.f32 %v675, %v761
    %v763 = vand.u32 %v102, 4294901760
    %764 = vmatmul.f32.gmra.mxu0 %v763
    %v765 = vpop.f32.mrf.mxu0
    %v766 = vadd.f32 %v679, %v765
    %v767 = vand.u32 %v105, 4294901760
    %768 = vmatmul.f32.gmra.mxu0 %v767
    %v769 = vpop.f32.mrf.mxu0
    %v770 = vadd.f32 %v683, %v769
    %v771 = vand.u32 %v108, 4294901760
    %772 = vmatmul.f32.gmra.mxu0 %v771
    %v773 = vpop.f32.mrf.mxu0
    %v774 = vadd.f32 %v687, %v773
    %v775 = vand.u32 %v111, 4294901760
    %776 = vmatmul.f32.gmra.mxu0 %v775
    %v777 = vpop.f32.mrf.mxu0
    %v778 = vadd.f32 %v691, %v777
    %v779 = vand.u32 %v114, 4294901760
    %780 = vmatmul.f32.gmra.mxu0 %v779
    %v781 = vpop.f32.mrf.mxu0
    %v782 = vadd.f32 %v695, %v781
    %v783 = vand.u32 %v117, 4294901760
    %784 = vmatmul.f32.gmra.mxu0 %v783
    %v785 = vpop.f32.mrf.mxu0
    %v786 = vadd.f32 %v699, %v785
    %v787 = vand.u32 %v120, 4294901760
    %788 = vmatmul.f32.gmra.mxu0 %v787
    %v789 = vpop.f32.mrf.mxu0
    %v790 = vadd.f32 %v703, %v789
    %v791 = vand.u32 %v123, 4294901760
    %792 = vmatmul.f32.gmra.mxu0 %v791
    %v793 = vpop.f32.mrf.mxu0
    %v794 = vadd.f32 %v707, %v793
    %v795 = vand.u32 %v126, 4294901760
    %796 = vmatmul.f32.gmra.mxu0 %v795
    %v797 = vpop.f32.mrf.mxu0
    %v798 = vadd.f32 %v711, %v797
    %v799 = vand.u32 %v129, 4294901760
    %800 = vmatmul.f32.gmra.mxu0 %v799
    %v801 = vpop.f32.mrf.mxu0
    %v802 = vadd.f32 %v715, %v801
    %v803 = vand.u32 %v132, 4294901760
    %804 = vmatmul.f32.gmra.mxu0 %v803
    %v805 = vpop.f32.mrf.mxu0
    %v806 = vadd.f32 %v719, %v805
    %v807 = vand.u32 %v135, 4294901760
    %808 = vmatmul.f32.gmra.mxu0 %v807
    %v809 = vpop.f32.mrf.mxu0
    %v810 = vadd.f32 %v723, %v809
    %v811 = vand.u32 %v138, 4294901760
    %812 = vmatmul.f32.gmra.mxu0 %v811
    %v813 = vpop.f32.mrf.mxu0
    %v814 = vadd.f32 %v727, %v813
    %815 = vdwg.mxu0
    %816 = vst [vmem:[#allocation2] sm:$0xff] %v754
    %817 = vst [vmem:[#allocation2 + $0x8] sm:$0xff] %v758
    %818 = vst [vmem:[#allocation2 + $0x10] sm:$0xff] %v762
    %819 = vst [vmem:[#allocation2 + $0x18] sm:$0xff] %v766
    %820 = vst [vmem:[#allocation2 + $0x20] sm:$0xff] %v770
    %821 = vst [vmem:[#allocation2 + $0x28] sm:$0xff] %v774
    %822 = vst [vmem:[#allocation2 + $0x30] sm:$0xff] %v778
    %823 = vst [vmem:[#allocation2 + $0x38] sm:$0xff] %v782
    %824 = vst [vmem:[#allocation2 + $0x40] sm:$0xff] %v786
    %825 = vst [vmem:[#allocation2 + $0x48] sm:$0xff] %v790
    %826 = vst [vmem:[#allocation2 + $0x50] sm:$0xff] %v794
    %827 = vst [vmem:[#allocation2 + $0x58] sm:$0xff] %v798
    %828 = vst [vmem:[#allocation2 + $0x60] sm:$0xff] %v802
    %829 = vst [vmem:[#allocation2 + $0x68] sm:$0xff] %v806
    %830 = vst [vmem:[#allocation2 + $0x70] sm:$0xff] %v810
    %831 = vst [vmem:[#allocation2 + $0x78] sm:$0xff] %v814
    %v832 = vlaneseq
    %v833 = vand.u32 %v832, 127
    %vm834 = vcmp.lt.s32.totalorder %v833, 96
    %v835 = vsel %vm834, 0.05, 0.15
    %v836 = vmul.f32 %v835, 0.1
    %v837 = vld [vmem:[#allocation6] sm:$0xff]
    %s838 = scalar_lea.vmem [#allocation6], 8
    %v839 = vld [vmem:[%s838] sm:$0xff]
    %v840 = vld [vmem:[#allocation8] sm:$0xff]
    %s841 = scalar_lea.vmem [#allocation8], 8
    %v842 = vld [vmem:[%s841] sm:$0xff]
    %v843 = vld [vmem:[#allocation2] sm:$0xff]
    %v844 = vadd.f32 %v839, %v843
    %v845 = vmul.f32 %v837, 0.9
    %v846 = vadd.f32 %v845, %v836
    %v847 = vmul.f32 %v844, 0.1
    %v848 = vadd.f32 %v846, %v847
    %v849 = vmul.f32 %v844, 0.8
    %851 = vrot.lane.b32.xlu0 %v848, 32
    %v852 = vpop.permute.xlu0 %851
    %v854 = vadd.f32 %v842, %v852
    %v855 = vmul.f32 %v840, 0.9
    %v856 = vadd.f32 %v855, 0.005
    %v857 = vmul.f32 %v854, 0.1
    %v858 = vadd.f32 %v856, %v857
    %v859 = vmul.f32 %v854, 0.8
    %vm860 = vcmask 261120
    %861 = vst.msk [vmem:[#allocation9] sm:$0xff] %vm860, %v858
    %v862 = vld [vmem:[#allocation2 + $0x8] sm:$0xff]
    %v863 = vadd.f32 %v849, %v862
    %v864 = vmul.f32 %v848, 0.9
    %v865 = vadd.f32 %v864, %v836
    %v866 = vmul.f32 %v863, 0.1
    %v867 = vadd.f32 %v865, %v866
    %v868 = vmul.f32 %v863, 0.8
    %870 = vrot.lane.b32.xlu0 %v867, 32
    %v871 = vpop.permute.xlu0 %870
    %v873 = vadd.f32 %v859, %v871
    %v874 = vmul.f32 %v858, 0.9
    %v875 = vadd.f32 %v874, 0.005
    %v876 = vmul.f32 %v873, 0.1
    %v877 = vadd.f32 %v875, %v876
    %v878 = vmul.f32 %v873, 0.8
    %s879 = scalar_lea.vmem [#allocation9], 8
    %880 = vst.msk [vmem:[%s879] sm:$0xff] %vm860, %v877
    %v881 = vld [vmem:[#allocation2 + $0x10] sm:$0xff]
    %v882 = vadd.f32 %v868, %v881
    %v883 = vmul.f32 %v867, 0.9
    %v884 = vadd.f32 %v883, %v836
    %v885 = vmul.f32 %v882, 0.1
    %v886 = vadd.f32 %v884, %v885
    %v887 = vmul.f32 %v882, 0.8
    %889 = vrot.lane.b32.xlu0 %v886, 32
    %v890 = vpop.permute.xlu0 %889
    %v892 = vadd.f32 %v878, %v890
    %v893 = vmul.f32 %v877, 0.9
    %v894 = vadd.f32 %v893, 0.005
    %v895 = vmul.f32 %v892, 0.1
    %v896 = vadd.f32 %v894, %v895
    %v897 = vmul.f32 %v892, 0.8
    %s898 = scalar_lea.vmem [#allocation9], 16
    %899 = vst.msk [vmem:[%s898] sm:$0xff] %vm860, %v896
    %v900 = vld [vmem:[#allocation2 + $0x18] sm:$0xff]
    %v901 = vadd.f32 %v887, %v900
    %v902 = vmul.f32 %v886, 0.9
    %v903 = vadd.f32 %v902, %v836
    %v904 = vmul.f32 %v901, 0.1
    %v905 = vadd.f32 %v903, %v904
    %v906 = vmul.f32 %v901, 0.8
    %908 = vrot.lane.b32.xlu0 %v905, 32
    %v909 = vpop.permute.xlu0 %908
    %v911 = vadd.f32 %v897, %v909
    %v912 = vmul.f32 %v896, 0.9
    %v913 = vadd.f32 %v912, 0.005
    %v914 = vmul.f32 %v911, 0.1
    %v915 = vadd.f32 %v913, %v914
    %v916 = vmul.f32 %v911, 0.8
    %s917 = scalar_lea.vmem [#allocation9], 24
    %918 = vst.msk [vmem:[%s917] sm:$0xff] %vm860, %v915
    %v919 = vld [vmem:[#allocation2 + $0x20] sm:$0xff]
    %v920 = vadd.f32 %v906, %v919
    %v921 = vmul.f32 %v905, 0.9
    %v922 = vadd.f32 %v921, %v836
    %v923 = vmul.f32 %v920, 0.1
    %v924 = vadd.f32 %v922, %v923
    %v925 = vmul.f32 %v920, 0.8
    %927 = vrot.lane.b32.xlu0 %v924, 32
    %v928 = vpop.permute.xlu0 %927
    %v930 = vadd.f32 %v916, %v928
    %v931 = vmul.f32 %v915, 0.9
    %v932 = vadd.f32 %v931, 0.005
    %v933 = vmul.f32 %v930, 0.1
    %v934 = vadd.f32 %v932, %v933
    %v935 = vmul.f32 %v930, 0.8
    %s936 = scalar_lea.vmem [#allocation9], 32
    %937 = vst.msk [vmem:[%s936] sm:$0xff] %vm860, %v934
    %v938 = vld [vmem:[#allocation2 + $0x28] sm:$0xff]
    %v939 = vadd.f32 %v925, %v938
    %v940 = vmul.f32 %v924, 0.9
    %v941 = vadd.f32 %v940, %v836
    %v942 = vmul.f32 %v939, 0.1
    %v943 = vadd.f32 %v941, %v942
    %v944 = vmul.f32 %v939, 0.8
    %946 = vrot.lane.b32.xlu0 %v943, 32
    %v947 = vpop.permute.xlu0 %946
    %v949 = vadd.f32 %v935, %v947
    %v950 = vmul.f32 %v934, 0.9
    %v951 = vadd.f32 %v950, 0.005
    %v952 = vmul.f32 %v949, 0.1
    %v953 = vadd.f32 %v951, %v952
    %v954 = vmul.f32 %v949, 0.8
    %s955 = scalar_lea.vmem [#allocation9], 40
    %956 = vst.msk [vmem:[%s955] sm:$0xff] %vm860, %v953
    %v957 = vld [vmem:[#allocation2 + $0x30] sm:$0xff]
    %v958 = vadd.f32 %v944, %v957
    %v959 = vmul.f32 %v943, 0.9
    %v960 = vadd.f32 %v959, %v836
    %v961 = vmul.f32 %v958, 0.1
    %v962 = vadd.f32 %v960, %v961
    %v963 = vmul.f32 %v958, 0.8
    %965 = vrot.lane.b32.xlu0 %v962, 32
    %v966 = vpop.permute.xlu0 %965
    %v968 = vadd.f32 %v954, %v966
    %v969 = vmul.f32 %v953, 0.9
    %v970 = vadd.f32 %v969, 0.005
    %v971 = vmul.f32 %v968, 0.1
    %v972 = vadd.f32 %v970, %v971
    %v973 = vmul.f32 %v968, 0.8
    %s974 = scalar_lea.vmem [#allocation9], 48
    %975 = vst.msk [vmem:[%s974] sm:$0xff] %vm860, %v972
    %v976 = vld [vmem:[#allocation2 + $0x38] sm:$0xff]
    %v977 = vadd.f32 %v963, %v976
    %v978 = vmul.f32 %v962, 0.9
    %v979 = vadd.f32 %v978, %v836
    %v980 = vmul.f32 %v977, 0.1
    %v981 = vadd.f32 %v979, %v980
    %v982 = vmul.f32 %v977, 0.8
    %984 = vrot.lane.b32.xlu0 %v981, 32
    %v985 = vpop.permute.xlu0 %984
    %v987 = vadd.f32 %v973, %v985
    %v988 = vmul.f32 %v972, 0.9
    %v989 = vadd.f32 %v988, 0.005
    %v990 = vmul.f32 %v987, 0.1
    %v991 = vadd.f32 %v989, %v990
    %v992 = vmul.f32 %v987, 0.8
    %s993 = scalar_lea.vmem [#allocation9], 56
    %994 = vst.msk [vmem:[%s993] sm:$0xff] %vm860, %v991
    %v995 = vld [vmem:[#allocation2 + $0x40] sm:$0xff]
    %v996 = vadd.f32 %v982, %v995
    %v997 = vmul.f32 %v981, 0.9
    %v998 = vadd.f32 %v997, %v836
    %v999 = vmul.f32 %v996, 0.1
    %v1000 = vadd.f32 %v998, %v999
    %v1001 = vmul.f32 %v996, 0.8
    %1003 = vrot.lane.b32.xlu0 %v1000, 32
    %v1004 = vpop.permute.xlu0 %1003
    %v1006 = vadd.f32 %v992, %v1004
    %v1007 = vmul.f32 %v991, 0.9
    %v1008 = vadd.f32 %v1007, 0.005
    %v1009 = vmul.f32 %v1006, 0.1
    %v1010 = vadd.f32 %v1008, %v1009
    %v1011 = vmul.f32 %v1006, 0.8
    %s1012 = scalar_lea.vmem [#allocation9], 64
    %1013 = vst.msk [vmem:[%s1012] sm:$0xff] %vm860, %v1010
    %v1014 = vld [vmem:[#allocation2 + $0x48] sm:$0xff]
    %v1015 = vadd.f32 %v1001, %v1014
    %v1016 = vmul.f32 %v1000, 0.9
    %v1017 = vadd.f32 %v1016, %v836
    %v1018 = vmul.f32 %v1015, 0.1
    %v1019 = vadd.f32 %v1017, %v1018
    %v1020 = vmul.f32 %v1015, 0.8
    %1022 = vrot.lane.b32.xlu0 %v1019, 32
    %v1023 = vpop.permute.xlu0 %1022
    %v1025 = vadd.f32 %v1011, %v1023
    %v1026 = vmul.f32 %v1010, 0.9
    %v1027 = vadd.f32 %v1026, 0.005
    %v1028 = vmul.f32 %v1025, 0.1
    %v1029 = vadd.f32 %v1027, %v1028
    %v1030 = vmul.f32 %v1025, 0.8
    %s1031 = scalar_lea.vmem [#allocation9], 72
    %1032 = vst.msk [vmem:[%s1031] sm:$0xff] %vm860, %v1029
    %v1033 = vld [vmem:[#allocation2 + $0x50] sm:$0xff]
    %v1034 = vadd.f32 %v1020, %v1033
    %v1035 = vmul.f32 %v1019, 0.9
    %v1036 = vadd.f32 %v1035, %v836
    %v1037 = vmul.f32 %v1034, 0.1
    %v1038 = vadd.f32 %v1036, %v1037
    %v1039 = vmul.f32 %v1034, 0.8
    %1041 = vrot.lane.b32.xlu0 %v1038, 32
    %v1042 = vpop.permute.xlu0 %1041
    %v1044 = vadd.f32 %v1030, %v1042
    %v1045 = vmul.f32 %v1029, 0.9
    %v1046 = vadd.f32 %v1045, 0.005
    %v1047 = vmul.f32 %v1044, 0.1
    %v1048 = vadd.f32 %v1046, %v1047
    %v1049 = vmul.f32 %v1044, 0.8
    %s1050 = scalar_lea.vmem [#allocation9], 80
    %1051 = vst.msk [vmem:[%s1050] sm:$0xff] %vm860, %v1048
    %v1052 = vld [vmem:[#allocation2 + $0x58] sm:$0xff]
    %v1053 = vadd.f32 %v1039, %v1052
    %v1054 = vmul.f32 %v1038, 0.9
    %v1055 = vadd.f32 %v1054, %v836
    %v1056 = vmul.f32 %v1053, 0.1
    %v1057 = vadd.f32 %v1055, %v1056
    %v1058 = vmul.f32 %v1053, 0.8
    %1060 = vrot.lane.b32.xlu0 %v1057, 32
    %v1061 = vpop.permute.xlu0 %1060
    %v1063 = vadd.f32 %v1049, %v1061
    %v1064 = vmul.f32 %v1048, 0.9
    %v1065 = vadd.f32 %v1064, 0.005
    %v1066 = vmul.f32 %v1063, 0.1
    %v1067 = vadd.f32 %v1065, %v1066
    %v1068 = vmul.f32 %v1063, 0.8
    %s1069 = scalar_lea.vmem [#allocation9], 88
    %1070 = vst.msk [vmem:[%s1069] sm:$0xff] %vm860, %v1067
    %v1071 = vld [vmem:[#allocation2 + $0x60] sm:$0xff]
    %v1072 = vadd.f32 %v1058, %v1071
    %v1073 = vmul.f32 %v1057, 0.9
    %v1074 = vadd.f32 %v1073, %v836
    %v1075 = vmul.f32 %v1072, 0.1
    %v1076 = vadd.f32 %v1074, %v1075
    %v1077 = vmul.f32 %v1072, 0.8
    %1079 = vrot.lane.b32.xlu0 %v1076, 32
    %v1080 = vpop.permute.xlu0 %1079
    %v1082 = vadd.f32 %v1068, %v1080
    %v1083 = vmul.f32 %v1067, 0.9
    %v1084 = vadd.f32 %v1083, 0.005
    %v1085 = vmul.f32 %v1082, 0.1
    %v1086 = vadd.f32 %v1084, %v1085
    %v1087 = vmul.f32 %v1082, 0.8
    %s1088 = scalar_lea.vmem [#allocation9], 96
    %1089 = vst.msk [vmem:[%s1088] sm:$0xff] %vm860, %v1086
    %v1090 = vld [vmem:[#allocation2 + $0x68] sm:$0xff]
    %v1091 = vadd.f32 %v1077, %v1090
    %v1092 = vmul.f32 %v1076, 0.9
    %v1093 = vadd.f32 %v1092, %v836
    %v1094 = vmul.f32 %v1091, 0.1
    %v1095 = vadd.f32 %v1093, %v1094
    %v1096 = vmul.f32 %v1091, 0.8
    %1098 = vrot.lane.b32.xlu0 %v1095, 32
    %v1099 = vpop.permute.xlu0 %1098
    %v1101 = vadd.f32 %v1087, %v1099
    %v1102 = vmul.f32 %v1086, 0.9
    %v1103 = vadd.f32 %v1102, 0.005
    %v1104 = vmul.f32 %v1101, 0.1
    %v1105 = vadd.f32 %v1103, %v1104
    %v1106 = vmul.f32 %v1101, 0.8
    %s1107 = scalar_lea.vmem [#allocation9], 104
    %1108 = vst.msk [vmem:[%s1107] sm:$0xff] %vm860, %v1105
    %v1109 = vld [vmem:[#allocation2 + $0x70] sm:$0xff]
    %v1110 = vadd.f32 %v1096, %v1109
    %v1111 = vmul.f32 %v1095, 0.9
    %v1112 = vadd.f32 %v1111, %v836
    %v1113 = vmul.f32 %v1110, 0.1
    %v1114 = vadd.f32 %v1112, %v1113
    %v1115 = vmul.f32 %v1110, 0.8
    %1117 = vrot.lane.b32.xlu0 %v1114, 32
    %v1118 = vpop.permute.xlu0 %1117
    %v1120 = vadd.f32 %v1106, %v1118
    %v1121 = vmul.f32 %v1105, 0.9
    %v1122 = vadd.f32 %v1121, 0.005
    %v1123 = vmul.f32 %v1120, 0.1
    %v1124 = vadd.f32 %v1122, %v1123
    %v1125 = vmul.f32 %v1120, 0.8
    %s1126 = scalar_lea.vmem [#allocation9], 112
    %1127 = vst.msk [vmem:[%s1126] sm:$0xff] %vm860, %v1124
    %v1128 = vld [vmem:[#allocation2 + $0x78] sm:$0xff]
    %v1129 = vadd.f32 %v1115, %v1128
    %v1130 = vmul.f32 %v1114, 0.9
    %v1131 = vadd.f32 %v1130, %v836
    %v1132 = vmul.f32 %v1129, 0.1
    %v1133 = vadd.f32 %v1131, %v1132
    %v1134 = vmul.f32 %v1129, 0.8
    %1136 = vrot.lane.b32.xlu0 %v1133, 32
    %v1137 = vpop.permute.xlu0 %1136
    %v1139 = vadd.f32 %v1125, %v1137
    %v1140 = vmul.f32 %v1124, 0.9
    %v1141 = vadd.f32 %v1140, 0.005
    %v1142 = vmul.f32 %v1139, 0.1
    %v1143 = vadd.f32 %v1141, %v1142
    %v1144 = vmul.f32 %v1139, 0.8
    %s1145 = scalar_lea.vmem [#allocation9], 120
    %1146 = vst.msk [vmem:[%s1145] sm:$0xff] %vm860, %v1143
    %1147 = vst [vmem:[#allocation10] sm:$0xff] %v1133
    %s1148 = scalar_lea.vmem [#allocation10], 8
    %1149 = vst [vmem:[%s1148] sm:$0xff] %v1134
    %1150 = vst.msk [vmem:[#allocation12] sm:$0xff] %vm860, %v1143
    %s1151 = scalar_lea.vmem [#allocation12], 8
    %1152 = vst.msk [vmem:[%s1151] sm:$0xff] %vm860, %v1144
    // Predicated region
    $region30: #{forward.1} parent=1 // pred_check
      _
    $region31: #{forward.1} parent=1 // pred_check_branch
      %1154 = sbr.rel (0) target = $region33
    $region32: #{forward.1} parent=1 // pred_region
      %1156 = vsyncadd [#allocation5], 0
      %s1157 = sshll.u32 [#allocation9], 4
      %s1158 = int_to_ptr.vmem [resolvable:$true] %s1157
      %s1159 = sshll.u32 %s4, 4
      %s1160 = int_to_ptr.hbm [resolvable:$true] %s1159
      %1165 = dma.vmem_to_hbm [thread:$0]  %s1158, 2048, %s1160, [#allocation5], 128, 128, 8
    $region33: #{forward.1} parent=1 // pred_fallthru
      _
    // Predicated region
    $region34: #{forward.1} parent=1 // pred_check
      _
    $region35: #{forward.1} parent=1 // pred_check_branch
      %1167 = sbr.rel (0) target = $region37
    $region36: #{forward.1} parent=1 // pred_region
      %1169 = vsyncadd [#allocation11], 0
      %s1170 = sshll.u32 [#allocation10], 4
      %s1171 = int_to_ptr.vmem [resolvable:$true] %s1170
      %s1172 = sshll.u32 %s5, 4
      %s1173 = int_to_ptr.hbm [resolvable:$true] %s1172
      %1178 = dma.vmem_to_hbm [thread:$0]  %s1171, 256, %s1173, [#allocation11], 128, 128, 8
    $region37: #{forward.1} parent=1 // pred_fallthru
      _
    // Predicated region
    $region38: #{forward.1} parent=1 // pred_check
      _
    $region39: #{forward.1} parent=1 // pred_check_branch
      %1180 = sbr.rel (0) target = $region41
    $region40: #{forward.1} parent=1 // pred_region
      %1182 = vsyncadd [#allocation11], 0
      %s1183 = sshll.u32 [#allocation12], 4
      %s1184 = int_to_ptr.vmem [resolvable:$true] %s1183
      %s1185 = sshll.u32 %s6, 4
      %s1186 = int_to_ptr.hbm [resolvable:$true] %s1185
      %1191 = dma.vmem_to_hbm [thread:$0]  %s1184, 256, %s1186, [#allocation11], 128, 128, 8
    $region41: #{forward.1} parent=1 // pred_fallthru
      _
    // Predicated region
    $region42: #{forward.1} parent=1 // pred_check
      _
    $region43: #{forward.1} parent=1 // pred_check_branch
      %1193 = sbr.rel (0) target = $region45
    $region44: #{forward.1} parent=1 // pred_region
      %1195 = dma.done [#allocation5], 2048
    $region45: #{forward.1} parent=1 // pred_fallthru
      _
    // Predicated region
    $region46: #{forward.1} parent=1 // pred_check
      _
    $region47: #{forward.1} parent=1 // pred_check_branch
      %1197 = sbr.rel (0) target = $region49
    $region48: #{forward.1} parent=1 // pred_region
      %1199 = dma.done [#allocation11], 256
    $region49: #{forward.1} parent=1 // pred_fallthru
      _
    // Predicated region
    $region50: #{forward.1} parent=1 // pred_check
      _
    $region51: #{forward.1} parent=1 // pred_check_branch
      %1201 = sbr.rel (0) target = $region53
    $region52: #{forward.1} parent=1 // pred_region
      %1203 = dma.done [#allocation11], 256
    $region53: #{forward.1} parent=1 // pred_fallthru
      _
    %1204 = vsyncpa [#allocation4], 1
    %1205 = vsyncpa [#allocation7], 1
    %1206 = vsyncpa [#allocation5], 1
    %1207 = vsyncpa [#allocation11], 1

</llo_original>
